<compile_context>
chip_gen: v7x
topology: tpu7x:2x2x1
jax: 0.10.0
libtpu: 0.0.40
codegen_flags: <defaults>
</compile_context>

<pallas_src>
import jax
import jax.numpy as jnp
from jax import lax
from jax.experimental import pallas as pl
from jax.experimental.pallas import tpu as pltpu

# dot_general dims contracting the last axis of both operands: W[out,in] . X[B,in]^T
_NT_DIMS = (((1,), (1,)), ((), ()))


def make_mlp_kernel(hidden_sizes, n_out):
    """hidden_sizes = (h1, h2, h3, h4); all hidden widths must match (32 here)."""

    def mlp_kernel(x_ref, w1_ref, wp_ref, bp_ref, o_ref):
        # Layer 1: [h1, n_feature] x [B, n_feature]^T -> [h1, B]; MXU absorbs x^T.
        h = lax.dot_general(w1_ref[...], x_ref[...], _NT_DIMS,
                            preferred_element_type=jnp.float32)
        b_off = 0
        h = jnp.maximum(h + bp_ref[b_off:b_off + hidden_sizes[0], :], 0.0)
        b_off += hidden_sizes[0]

        # Hidden layers 2-4: W @ h + b in transposed (batch-on-lanes) layout.
        w_off = 0
        for out_dim in hidden_sizes[1:]:
            w = wp_ref[w_off:w_off + out_dim, :]          # static, 8-aligned row view
            h = jnp.maximum(
                jnp.dot(w, h, preferred_element_type=jnp.float32)
                + bp_ref[b_off:b_off + out_dim, :], 0.0)
            w_off += out_dim
            b_off += out_dim

        # Output layer: [n_out, B] lane-dense store.
        w5 = wp_ref[w_off:w_off + n_out, :]
        y = (jnp.dot(w5, h, preferred_element_type=jnp.float32)
             + bp_ref[b_off:b_off + n_out, :])
        o_ref[...] = y.astype(o_ref.dtype)

    return mlp_kernel


def net_forward(x, params):
    """x: [B, n_feature] f32; params: list of (W [out, in], b [out]) in PyTorch layout."""
    B, n_feature = x.shape
    (w1, b1) = params[0]
    n_out = params[-1][0].shape[0]
    hidden_sizes = tuple(w.shape[0] for (w, _) in params[:-1])

    # Pack W2..W5 along rows (all have 32 input columns) and all biases as a column.
    w_pack = jnp.concatenate([w for (w, _) in params[1:]], axis=0)          # [98, 32]
    b_pack = jnp.concatenate([b for (_, b) in params], axis=0)[:, None]     # [130, 1]

    kernel = make_mlp_kernel(hidden_sizes, n_out)

    out_t = pl.pallas_call(
        kernel,
        out_shape=jax.ShapeDtypeStruct((n_out, B), jnp.float32),
        grid=(1,),
        in_specs=[
            pl.BlockSpec((B, n_feature), lambda i: (0, 0)),
            pl.BlockSpec(w1.shape, lambda i: (0, 0)),
            pl.BlockSpec(w_pack.shape, lambda i: (0, 0)),
            pl.BlockSpec(b_pack.shape, lambda i: (0, 0)),
        ],
        out_specs=pl.BlockSpec((n_out, B), lambda i: (0, 0)),
        compiler_params=pltpu.CompilerParams(
            dimension_semantics=("arbitrary",)),
    )(x, w1, w_pack, b_pack)

    return out_t.T                                   # back to [B, n_out]


def init_params(key, dims):
    """PyTorch nn.Linear-style init: U(-1/sqrt(fan_in), 1/sqrt(fan_in)), W is [out, in]."""
    params = []
    for fan_in, fan_out in zip(dims[:-1], dims[1:]):
        key, kw, kb = jax.random.split(key, 3)
        bound = 1.0 / jnp.sqrt(fan_in)
        w = jax.random.uniform(kw, (fan_out, fan_in), jnp.float32, -bound, bound)
        b = jax.random.uniform(kb, (fan_out,), jnp.float32, -bound, bound)
        params.append((w, b))
    return params


def reference_forward(x, params):
    h = x
    for i, (w, b) in enumerate(params):
        h = jnp.dot(h, w.T, precision=jax.lax.Precision.HIGHEST) + b
        if i < len(params) - 1:
            h = jnp.maximum(h, 0.0)
    return h


if __name__ == "__main__":
    key = jax.random.PRNGKey(0)
    key, k0, k1 = jax.random.split(key, 3)

    # Mirrors the script's data: 600 points ~ N(+2, 1) and 600 ~ N(-2, 1) in 2-D.
    n_per_class = 600
    n_feature, h1, h2, h3, h4, n_output = 2, 32, 32, 32, 32, 2

    x0 = 2.0 + jax.random.normal(k0, (n_per_class, n_feature), jnp.float32)
    x1 = -2.0 + jax.random.normal(k1, (n_per_class, n_feature), jnp.float32)
    x = jnp.concatenate([x0, x1], axis=0)       # [1200, 2]

    params = init_params(key, [n_feature, h1, h2, h3, h4, n_output])

    out = jax.block_until_ready(net_forward(x, params))
    ref = reference_forward(x, params)

    assert out.shape == (2 * n_per_class, n_output)
    assert jnp.allclose(out, ref, atol=1e-4, rtol=1e-4), "mismatch vs reference"

    print("KERNEL_OK")
</pallas_src>

<mosaic_0001>
module attributes {stable_mosaic.version = 11 : i64} {
  func.func @mlp_kernel(%arg0: i32, %arg1: memref<1200x2xf32, #tpu.memory_space<vmem>>, %arg2: memref<32x2xf32, #tpu.memory_space<vmem>>, %arg3: memref<98x32xf32, #tpu.memory_space<vmem>>, %arg4: memref<130x1xf32, #tpu.memory_space<vmem>>, %arg5: memref<2x1200xf32, #tpu.memory_space<vmem>>) attributes {dimension_semantics = [#tpu.dimension_semantics<arbitrary>], iteration_bounds = array<i64: 1>, scalar_prefetch = 0 : i64, scratch_operands = 0 : i64, tpu.core_type = #tpu.core_type<tc>, window_params = [{pipeline_mode = #tpu.pipeline_mode<synchronous>, transform_indices = @transform_0, window_bounds = array<i64: 1200, 2>}, {pipeline_mode = #tpu.pipeline_mode<synchronous>, transform_indices = @transform_1, window_bounds = array<i64: 32, 2>}, {pipeline_mode = #tpu.pipeline_mode<synchronous>, transform_indices = @transform_2, window_bounds = array<i64: 98, 32>}, {pipeline_mode = #tpu.pipeline_mode<synchronous>, transform_indices = @transform_3, window_bounds = array<i64: 130, 1>}, {pipeline_mode = #tpu.pipeline_mode<synchronous>, transform_indices = @transform_4, window_bounds = array<i64: 2, 1200>}]} {
    %c0 = arith.constant 0 : index
    %c0_0 = arith.constant 0 : index
    %0 = vector.load %arg2[%c0, %c0_0] : memref<32x2xf32, #tpu.memory_space<vmem>>, vector<32x2xf32>
    %c0_1 = arith.constant 0 : index
    %c0_2 = arith.constant 0 : index
    %1 = vector.load %arg1[%c0_1, %c0_2] : memref<1200x2xf32, #tpu.memory_space<vmem>>, vector<1200x2xf32>
    %cst = arith.constant dense<0.000000e+00> : vector<32x1200xf32>
    %2 = tpu.matmul %0, %1, %cst {dimension_numbers = #tpu.dot_dimension_numbers<[1], [1], [0], [0], [0, 0, 1, 0], [], []>} : vector<32x2xf32>, vector<1200x2xf32>, vector<32x1200xf32> -> vector<32x1200xf32>
    %c0_3 = arith.constant 0 : index
    %c0_4 = arith.constant 0 : index
    %3 = vector.load %arg4[%c0_3, %c0_4] : memref<130x1xf32, #tpu.memory_space<vmem>>, vector<32x1xf32>
    %4 = vector.broadcast %3 : vector<32x1xf32> to vector<32x1200xf32>
    %5 = arith.addf %2, %4 : vector<32x1200xf32>
    %cst_5 = arith.constant 0.000000e+00 : f32
    %6 = vector.broadcast %cst_5 : f32 to vector<32x1200xf32>
    %7 = arith.maximumf %5, %6 : vector<32x1200xf32>
    %c0_6 = arith.constant 0 : index
    %c0_7 = arith.constant 0 : index
    %8 = vector.load %arg3[%c0_6, %c0_7] : memref<98x32xf32, #tpu.memory_space<vmem>>, vector<32x32xf32>
    %cst_8 = arith.constant dense<0.000000e+00> : vector<32x1200xf32>
    %9 = tpu.matmul %8, %7, %cst_8 {dimension_numbers = #tpu.dot_dimension_numbers<[1], [0], [0], [1], [0, 0, 1, 1], [], []>} : vector<32x32xf32>, vector<32x1200xf32>, vector<32x1200xf32> -> vector<32x1200xf32>
    %c32 = arith.constant 32 : index
    %c0_9 = arith.constant 0 : index
    %10 = vector.load %arg4[%c32, %c0_9] : memref<130x1xf32, #tpu.memory_space<vmem>>, vector<32x1xf32>
    %11 = vector.broadcast %10 : vector<32x1xf32> to vector<32x1200xf32>
    %12 = arith.addf %9, %11 : vector<32x1200xf32>
    %cst_10 = arith.constant 0.000000e+00 : f32
    %13 = vector.broadcast %cst_10 : f32 to vector<32x1200xf32>
    %14 = arith.maximumf %12, %13 : vector<32x1200xf32>
    %c32_11 = arith.constant 32 : index
    %c0_12 = arith.constant 0 : index
    %15 = vector.load %arg3[%c32_11, %c0_12] : memref<98x32xf32, #tpu.memory_space<vmem>>, vector<32x32xf32>
    %cst_13 = arith.constant dense<0.000000e+00> : vector<32x1200xf32>
    %16 = tpu.matmul %15, %14, %cst_13 {dimension_numbers = #tpu.dot_dimension_numbers<[1], [0], [0], [1], [0, 0, 1, 1], [], []>} : vector<32x32xf32>, vector<32x1200xf32>, vector<32x1200xf32> -> vector<32x1200xf32>
    %c64 = arith.constant 64 : index
    %c0_14 = arith.constant 0 : index
    %17 = vector.load %arg4[%c64, %c0_14] : memref<130x1xf32, #tpu.memory_space<vmem>>, vector<32x1xf32>
    %18 = vector.broadcast %17 : vector<32x1xf32> to vector<32x1200xf32>
    %19 = arith.addf %16, %18 : vector<32x1200xf32>
    %cst_15 = arith.constant 0.000000e+00 : f32
    %20 = vector.broadcast %cst_15 : f32 to vector<32x1200xf32>
    %21 = arith.maximumf %19, %20 : vector<32x1200xf32>
    %c64_16 = arith.constant 64 : index
    %c0_17 = arith.constant 0 : index
    %22 = vector.load %arg3[%c64_16, %c0_17] : memref<98x32xf32, #tpu.memory_space<vmem>>, vector<32x32xf32>
    %cst_18 = arith.constant dense<0.000000e+00> : vector<32x1200xf32>
    %23 = tpu.matmul %22, %21, %cst_18 {dimension_numbers = #tpu.dot_dimension_numbers<[1], [0], [0], [1], [0, 0, 1, 1], [], []>} : vector<32x32xf32>, vector<32x1200xf32>, vector<32x1200xf32> -> vector<32x1200xf32>
    %c96 = arith.constant 96 : index
    %c0_19 = arith.constant 0 : index
    %24 = vector.load %arg4[%c96, %c0_19] : memref<130x1xf32, #tpu.memory_space<vmem>>, vector<32x1xf32>
    %25 = vector.broadcast %24 : vector<32x1xf32> to vector<32x1200xf32>
    %26 = arith.addf %23, %25 : vector<32x1200xf32>
    %cst_20 = arith.constant 0.000000e+00 : f32
    %27 = vector.broadcast %cst_20 : f32 to vector<32x1200xf32>
    %28 = arith.maximumf %26, %27 : vector<32x1200xf32>
    %c96_21 = arith.constant 96 : index
    %c0_22 = arith.constant 0 : index
    %29 = vector.load %arg3[%c96_21, %c0_22] : memref<98x32xf32, #tpu.memory_space<vmem>>, vector<2x32xf32>
    %cst_23 = arith.constant dense<0.000000e+00> : vector<2x1200xf32>
    %30 = tpu.matmul %29, %28, %cst_23 {dimension_numbers = #tpu.dot_dimension_numbers<[1], [0], [0], [1], [0, 0, 1, 1], [], []>} : vector<2x32xf32>, vector<32x1200xf32>, vector<2x1200xf32> -> vector<2x1200xf32>
    %c128 = arith.constant 128 : index
    %c0_24 = arith.constant 0 : index
    %31 = vector.load %arg4[%c128, %c0_24] : memref<130x1xf32, #tpu.memory_space<vmem>>, vector<2x1xf32>
    %32 = vector.broadcast %31 : vector<2x1xf32> to vector<2x1200xf32>
    %33 = arith.addf %30, %32 : vector<2x1200xf32>
    %c0_25 = arith.constant 0 : index
    %c0_26 = arith.constant 0 : index
    %34 = vector.load %arg5[%c0_25, %c0_26] : memref<2x1200xf32, #tpu.memory_space<vmem>>, vector<2x1200xf32>
    tpu.vector_store %arg5[%c0_25, %c0_26], %33 {strides = array<i32>} : memref<2x1200xf32, #tpu.memory_space<vmem>>, vector<2x1200xf32>,
    return
  }
  func.func @transform_0(%arg0: i32) -> (i32, i32) {
    %c0_i32 = arith.constant 0 : i32
    %c0_i32_0 = arith.constant 0 : i32
    %c0_i32_1 = arith.constant 0 : i32
    return %c0_i32, %c0_i32_0 : i32, i32
  }
  func.func @transform_1(%arg0: i32) -> (i32, i32) {
    %c0_i32 = arith.constant 0 : i32
    %c0_i32_0 = arith.constant 0 : i32
    %c0_i32_1 = arith.constant 0 : i32
    return %c0_i32, %c0_i32_0 : i32, i32
  }
  func.func @transform_2(%arg0: i32) -> (i32, i32) {
    %c0_i32 = arith.constant 0 : i32
    %c0_i32_0 = arith.constant 0 : i32
    %c0_i32_1 = arith.constant 0 : i32
    return %c0_i32, %c0_i32_0 : i32, i32
  }
  func.func @transform_3(%arg0: i32) -> (i32, i32) {
    %c0_i32 = arith.constant 0 : i32
    %c0_i32_0 = arith.constant 0 : i32
    %c0_i32_1 = arith.constant 0 : i32
    return %c0_i32, %c0_i32_0 : i32, i32
  }
  func.func @transform_4(%arg0: i32) -> (i32, i32) {
    %c0_i32 = arith.constant 0 : i32
    %c0_i32_0 = arith.constant 0 : i32
    %c0_i32_1 = arith.constant 0 : i32
    return %c0_i32, %c0_i32_0 : i32, i32
  }
}

</mosaic_0001>

<llo_original>
// kernel: tpu_custom_call.1
$region0: #{tpu_custom_call.1}
  #allocation0 [shape = 'u32[]', space=smem, size = 0x4, offset = 0x4, fixed_abs, tag = 'smem constant byte address 0x4 - core index']
  #allocation1 [shape = 'u32[144,128]{1,0:T(1,128)}', space=vmem, size = 0x12000, scoped, tag = 'internal scratch']
  %s0 = inlined_call_operand.vmem [shape: f32[1200,2], index: 0, kind: input, shape index: {}]
  %s1 = inlined_call_operand.vmem [shape: f32[32,2], index: 1, kind: input, shape index: {}]
  %s2 = inlined_call_operand.vmem [shape: f32[98,32], index: 2, kind: input, shape index: {}]
  %s3 = inlined_call_operand.vmem [shape: f32[130,1], index: 3, kind: input, shape index: {}]
  %s4 = inlined_call_operand.hbm [shape: f32[2,1200], index: 4, kind: output, shape index: {}]
  %s5 = sld [smem:[#allocation0]]
  $region26: #{tpu_custom_call.1} parent=0
    _
  %s7 = ssub.s32 1, %s5
  %s8 = scalar_select 0, %s7, %s5
  $region1: #{tpu_custom_call.1} parent=0
    #allocation2 [shape = 'u8[10240]{0}', space=vmem, size = 0x2800, scoped, tag = 'output window, operand 0, single buffered']
    #allocation3 [shape = 's32[1]{0}', space=sflag, size = 0x4, scoped, tag = 'scoped memory for tpu_custom_call.1']
    %9 = vsyncpa [#allocation3], 0
    // Predicated region
    $region2: #{tpu_custom_call.1} parent=1 // pred_check
      _
    $region3: #{tpu_custom_call.1} parent=1 // pred_check_branch
      %11 = sbr.rel (0) target = $region5
    $region4: #{tpu_custom_call.1} parent=1 // pred_region
      _
    $region5: #{tpu_custom_call.1} parent=1 // pred_fallthru
      _
    // Predicated region
    $region6: #{tpu_custom_call.1} parent=1 // pred_check
      _
    $region7: #{tpu_custom_call.1} parent=1 // pred_check_branch
      %13 = sbr.rel (0) target = $region9
    $region8: #{tpu_custom_call.1} parent=1 // pred_region
      _
    $region9: #{tpu_custom_call.1} parent=1 // pred_fallthru
      _
    // Predicated region
    $region10: #{tpu_custom_call.1} parent=1 // pred_check
      _
    $region11: #{tpu_custom_call.1} parent=1 // pred_check_branch
      %15 = sbr.rel (0) target = $region13
    $region12: #{tpu_custom_call.1} parent=1 // pred_region
      _
    $region13: #{tpu_custom_call.1} parent=1 // pred_fallthru
      _
    // Predicated region
    $region14: #{tpu_custom_call.1} parent=1 // pred_check
      _
    $region15: #{tpu_custom_call.1} parent=1 // pred_check_branch
      %17 = sbr.rel (0) target = $region17
    $region16: #{tpu_custom_call.1} parent=1 // pred_region
      _
    $region17: #{tpu_custom_call.1} parent=1 // pred_fallthru
      _
    %v18 = vld [vmem:[%s1] sm:$0xff]
    %v19 = vld [vmem:[%s1 + $0x8] sm:$0xff]
    %v20 = vld [vmem:[%s1 + $0x10] sm:$0xff]
    %v21 = vld [vmem:[%s1 + $0x18] sm:$0xff]
    %v22 = vld [vmem:[%s0] sm:$0xff]
    %v23 = vld [vmem:[%s0 + $0x8] sm:$0xff]
    %v24 = vld [vmem:[%s0 + $0x10] sm:$0xff]
    %v25 = vld [vmem:[%s0 + $0x18] sm:$0xff]
    %v26 = vld [vmem:[%s0 + $0x20] sm:$0xff]
    %v27 = vld [vmem:[%s0 + $0x28] sm:$0xff]
    %v28 = vld [vmem:[%s0 + $0x30] sm:$0xff]
    %v29 = vld [vmem:[%s0 + $0x38] sm:$0xff]
    %v30 = vld [vmem:[%s0 + $0x40] sm:$0xff]
    %v31 = vld [vmem:[%s0 + $0x48] sm:$0xff]
    %v32 = vld [vmem:[%s0 + $0x50] sm:$0xff]
    %v33 = vld [vmem:[%s0 + $0x58] sm:$0xff]
    %v34 = vld [vmem:[%s0 + $0x60] sm:$0xff]
    %v35 = vld [vmem:[%s0 + $0x68] sm:$0xff]
    %v36 = vld [vmem:[%s0 + $0x70] sm:$0xff]
    %v37 = vld [vmem:[%s0 + $0x78] sm:$0xff]
    %v38 = vld [vmem:[%s0 + $0x80] sm:$0xff]
    %v39 = vld [vmem:[%s0 + $0x88] sm:$0xff]
    %v40 = vld [vmem:[%s0 + $0x90] sm:$0xff]
    %v41 = vld [vmem:[%s0 + $0x98] sm:$0xff]
    %v42 = vld [vmem:[%s0 + $0xa0] sm:$0xff]
    %v43 = vld [vmem:[%s0 + $0xa8] sm:$0xff]
    %v44 = vld [vmem:[%s0 + $0xb0] sm:$0xff]
    %v45 = vld [vmem:[%s0 + $0xb8] sm:$0xff]
    %v46 = vld [vmem:[%s0 + $0xc0] sm:$0xff]
    %v47 = vld [vmem:[%s0 + $0xc8] sm:$0xff]
    %v48 = vld [vmem:[%s0 + $0xd0] sm:$0xff]
    %v49 = vld [vmem:[%s0 + $0xd8] sm:$0xff]
    %v50 = vld [vmem:[%s0 + $0xe0] sm:$0xff]
    %v51 = vld [vmem:[%s0 + $0xe8] sm:$0xff]
    %v52 = vld [vmem:[%s0 + $0xf0] sm:$0xff]
    %v53 = vld [vmem:[%s0 + $0xf8] sm:$0xff]
    %v54 = vld [vmem:[%s0 + $0x100] sm:$0xff]
    %v55 = vld [vmem:[%s0 + $0x108] sm:$0xff]
    %v56 = vld [vmem:[%s0 + $0x110] sm:$0xff]
    %v57 = vld [vmem:[%s0 + $0x118] sm:$0xff]
    %v58 = vld [vmem:[%s0 + $0x120] sm:$0xff]
    %v59 = vld [vmem:[%s0 + $0x128] sm:$0xff]
    %v60 = vld [vmem:[%s0 + $0x130] sm:$0xff]
    %v61 = vld [vmem:[%s0 + $0x138] sm:$0xff]
    %v62 = vld [vmem:[%s0 + $0x140] sm:$0xff]
    %v63 = vld [vmem:[%s0 + $0x148] sm:$0xff]
    %v64 = vld [vmem:[%s0 + $0x150] sm:$0xff]
    %v65 = vld [vmem:[%s0 + $0x158] sm:$0xff]
    %v66 = vld [vmem:[%s0 + $0x160] sm:$0xff]
    %v67 = vld [vmem:[%s0 + $0x168] sm:$0xff]
    %v68 = vld [vmem:[%s0 + $0x170] sm:$0xff]
    %v69 = vld [vmem:[%s0 + $0x178] sm:$0xff]
    %v70 = vld [vmem:[%s0 + $0x180] sm:$0xff]
    %v71 = vld [vmem:[%s0 + $0x188] sm:$0xff]
    %v72 = vld [vmem:[%s0 + $0x190] sm:$0xff]
    %v73 = vld [vmem:[%s0 + $0x198] sm:$0xff]
    %v74 = vld [vmem:[%s0 + $0x1a0] sm:$0xff]
    %v75 = vld [vmem:[%s0 + $0x1a8] sm:$0xff]
    %v76 = vld [vmem:[%s0 + $0x1b0] sm:$0xff]
    %v77 = vld [vmem:[%s0 + $0x1b8] sm:$0xff]
    %v78 = vld [vmem:[%s0 + $0x1c0] sm:$0xff]
    %v79 = vld [vmem:[%s0 + $0x1c8] sm:$0xff]
    %v80 = vld [vmem:[%s0 + $0x1d0] sm:$0xff]
    %v81 = vld [vmem:[%s0 + $0x1d8] sm:$0xff]
    %v82 = vld [vmem:[%s0 + $0x1e0] sm:$0xff]
    %v83 = vld [vmem:[%s0 + $0x1e8] sm:$0xff]
    %v84 = vld [vmem:[%s0 + $0x1f0] sm:$0xff]
    %v85 = vld [vmem:[%s0 + $0x1f8] sm:$0xff]
    %v86 = vld [vmem:[%s0 + $0x200] sm:$0xff]
    %v87 = vld [vmem:[%s0 + $0x208] sm:$0xff]
    %v88 = vld [vmem:[%s0 + $0x210] sm:$0xff]
    %v89 = vld [vmem:[%s0 + $0x218] sm:$0xff]
    %v90 = vld [vmem:[%s0 + $0x220] sm:$0xff]
    %v91 = vld [vmem:[%s0 + $0x228] sm:$0xff]
    %v92 = vld [vmem:[%s0 + $0x230] sm:$0xff]
    %v93 = vld [vmem:[%s0 + $0x238] sm:$0xff]
    %v94 = vld [vmem:[%s0 + $0x240] sm:$0xff]
    %v95 = vld [vmem:[%s0 + $0x248] sm:$0xff]
    %v96 = vld [vmem:[%s0 + $0x250] sm:$0xff]
    %v97 = vld [vmem:[%s0 + $0x258] sm:$0xff]
    %v98 = vld [vmem:[%s0 + $0x260] sm:$0xff]
    %v99 = vld [vmem:[%s0 + $0x268] sm:$0xff]
    %v100 = vld [vmem:[%s0 + $0x270] sm:$0xff]
    %v101 = vld [vmem:[%s0 + $0x278] sm:$0xff]
    %v102 = vld [vmem:[%s0 + $0x280] sm:$0xff]
    %v103 = vld [vmem:[%s0 + $0x288] sm:$0xff]
    %v104 = vld [vmem:[%s0 + $0x290] sm:$0xff]
    %v105 = vld [vmem:[%s0 + $0x298] sm:$0xff]
    %v106 = vld [vmem:[%s0 + $0x2a0] sm:$0xff]
    %v107 = vld [vmem:[%s0 + $0x2a8] sm:$0xff]
    %v108 = vld [vmem:[%s0 + $0x2b0] sm:$0xff]
    %v109 = vld [vmem:[%s0 + $0x2b8] sm:$0xff]
    %v110 = vld [vmem:[%s0 + $0x2c0] sm:$0xff]
    %v111 = vld [vmem:[%s0 + $0x2c8] sm:$0xff]
    %v112 = vld [vmem:[%s0 + $0x2d0] sm:$0xff]
    %v113 = vld [vmem:[%s0 + $0x2d8] sm:$0xff]
    %v114 = vld [vmem:[%s0 + $0x2e0] sm:$0xff]
    %v115 = vld [vmem:[%s0 + $0x2e8] sm:$0xff]
    %v116 = vld [vmem:[%s0 + $0x2f0] sm:$0xff]
    %v117 = vld [vmem:[%s0 + $0x2f8] sm:$0xff]
    %v118 = vld [vmem:[%s0 + $0x300] sm:$0xff]
    %v119 = vld [vmem:[%s0 + $0x308] sm:$0xff]
    %v120 = vld [vmem:[%s0 + $0x310] sm:$0xff]
    %v121 = vld [vmem:[%s0 + $0x318] sm:$0xff]
    %v122 = vld [vmem:[%s0 + $0x320] sm:$0xff]
    %v123 = vld [vmem:[%s0 + $0x328] sm:$0xff]
    %v124 = vld [vmem:[%s0 + $0x330] sm:$0xff]
    %v125 = vld [vmem:[%s0 + $0x338] sm:$0xff]
    %v126 = vld [vmem:[%s0 + $0x340] sm:$0xff]
    %v127 = vld [vmem:[%s0 + $0x348] sm:$0xff]
    %v128 = vld [vmem:[%s0 + $0x350] sm:$0xff]
    %v129 = vld [vmem:[%s0 + $0x358] sm:$0xff]
    %v130 = vld [vmem:[%s0 + $0x360] sm:$0xff]
    %v131 = vld [vmem:[%s0 + $0x368] sm:$0xff]
    %v132 = vld [vmem:[%s0 + $0x370] sm:$0xff]
    %v133 = vld [vmem:[%s0 + $0x378] sm:$0xff]
    %v134 = vld [vmem:[%s0 + $0x380] sm:$0xff]
    %v135 = vld [vmem:[%s0 + $0x388] sm:$0xff]
    %v136 = vld [vmem:[%s0 + $0x390] sm:$0xff]
    %v137 = vld [vmem:[%s0 + $0x398] sm:$0xff]
    %v138 = vld [vmem:[%s0 + $0x3a0] sm:$0xff]
    %v139 = vld [vmem:[%s0 + $0x3a8] sm:$0xff]
    %v140 = vld [vmem:[%s0 + $0x3b0] sm:$0xff]
    %v141 = vld [vmem:[%s0 + $0x3b8] sm:$0xff]
    %v142 = vld [vmem:[%s0 + $0x3c0] sm:$0xff]
    %v143 = vld [vmem:[%s0 + $0x3c8] sm:$0xff]
    %v144 = vld [vmem:[%s0 + $0x3d0] sm:$0xff]
    %v145 = vld [vmem:[%s0 + $0x3d8] sm:$0xff]
    %v146 = vld [vmem:[%s0 + $0x3e0] sm:$0xff]
    %v147 = vld [vmem:[%s0 + $0x3e8] sm:$0xff]
    %v148 = vld [vmem:[%s0 + $0x3f0] sm:$0xff]
    %v149 = vld [vmem:[%s0 + $0x3f8] sm:$0xff]
    %v150 = vld [vmem:[%s0 + $0x400] sm:$0xff]
    %v151 = vld [vmem:[%s0 + $0x408] sm:$0xff]
    %v152 = vld [vmem:[%s0 + $0x410] sm:$0xff]
    %v153 = vld [vmem:[%s0 + $0x418] sm:$0xff]
    %v154 = vld [vmem:[%s0 + $0x420] sm:$0xff]
    %v155 = vld [vmem:[%s0 + $0x428] sm:$0xff]
    %v156 = vld [vmem:[%s0 + $0x430] sm:$0xff]
    %v157 = vld [vmem:[%s0 + $0x438] sm:$0xff]
    %v158 = vld [vmem:[%s0 + $0x440] sm:$0xff]
    %v159 = vld [vmem:[%s0 + $0x448] sm:$0xff]
    %v160 = vld [vmem:[%s0 + $0x450] sm:$0xff]
    %v161 = vld [vmem:[%s0 + $0x458] sm:$0xff]
    %v162 = vld [vmem:[%s0 + $0x460] sm:$0xff]
    %v163 = vld [vmem:[%s0 + $0x468] sm:$0xff]
    %v164 = vld [vmem:[%s0 + $0x470] sm:$0xff]
    %v165 = vld [vmem:[%s0 + $0x478] sm:$0xff]
    %v166 = vld [vmem:[%s0 + $0x480] sm:$0xff]
    %v167 = vld [vmem:[%s0 + $0x488] sm:$0xff]
    %v168 = vld [vmem:[%s0 + $0x490] sm:$0xff]
    %v169 = vld [vmem:[%s0 + $0x498] sm:$0xff]
    %v170 = vld [vmem:[%s0 + $0x4a0] sm:$0xff]
    %v171 = vld [vmem:[%s0 + $0x4a8] sm:$0xff]
    %v172 = vld [vmem:[%s3] sm:$0xff]
    %v173 = vld [vmem:[%s3 + $0x8] sm:$0xff]
    %v174 = vld [vmem:[%s3 + $0x10] sm:$0xff]
    %v175 = vld [vmem:[%s3 + $0x18] sm:$0xff]
    %177 = vset.pattern.permute.xlu0 0
    %178 = vperm.xlu0 %177, %v172
    %v179 = vpop.permute.xlu0 %178
    %182 = vset.pattern.permute.xlu0 0
    %183 = vperm.xlu0 %182, %v173
    %v184 = vpop.permute.xlu0 %183
    %187 = vset.pattern.permute.xlu0 0
    %188 = vperm.xlu0 %187, %v174
    %v189 = vpop.permute.xlu0 %188
    %192 = vset.pattern.permute.xlu0 0
    %193 = vperm.xlu0 %192, %v175
    %v194 = vpop.permute.xlu0 %193
    %vm196 = vcmask 15360
    %v198 = vsel %vm196, %v18, 0
    %v201 = vsel %vm196, %v19, 0
    %v204 = vsel %vm196, %v20, 0
    %v207 = vsel %vm196, %v21, 0
    %v210 = vsel %vm196, %v22, 0
    %v213 = vsel %vm196, %v23, 0
    %v216 = vsel %vm196, %v24, 0
    %v219 = vsel %vm196, %v25, 0
    %v222 = vsel %vm196, %v26, 0
    %v225 = vsel %vm196, %v27, 0
    %v228 = vsel %vm196, %v28, 0
    %v231 = vsel %vm196, %v29, 0
    %v234 = vsel %vm196, %v30, 0
    %v237 = vsel %vm196, %v31, 0
    %v240 = vsel %vm196, %v32, 0
    %v243 = vsel %vm196, %v33, 0
    %v246 = vsel %vm196, %v34, 0
    %v249 = vsel %vm196, %v35, 0
    %v252 = vsel %vm196, %v36, 0
    %v255 = vsel %vm196, %v37, 0
    %v258 = vsel %vm196, %v38, 0
    %v261 = vsel %vm196, %v39, 0
    %v264 = vsel %vm196, %v40, 0
    %v267 = vsel %vm196, %v41, 0
    %v270 = vsel %vm196, %v42, 0
    %v273 = vsel %vm196, %v43, 0
    %v276 = vsel %vm196, %v44, 0
    %v279 = vsel %vm196, %v45, 0
    %v282 = vsel %vm196, %v46, 0
    %v285 = vsel %vm196, %v47, 0
    %v288 = vsel %vm196, %v48, 0
    %v291 = vsel %vm196, %v49, 0
    %v294 = vsel %vm196, %v50, 0
    %v297 = vsel %vm196, %v51, 0
    %v300 = vsel %vm196, %v52, 0
    %v303 = vsel %vm196, %v53, 0
    %v306 = vsel %vm196, %v54, 0
    %v309 = vsel %vm196, %v55, 0
    %v312 = vsel %vm196, %v56, 0
    %v315 = vsel %vm196, %v57, 0
    %v318 = vsel %vm196, %v58, 0
    %v321 = vsel %vm196, %v59, 0
    %v324 = vsel %vm196, %v60, 0
    %v327 = vsel %vm196, %v61, 0
    %v330 = vsel %vm196, %v62, 0
    %v333 = vsel %vm196, %v63, 0
    %v336 = vsel %vm196, %v64, 0
    %v339 = vsel %vm196, %v65, 0
    %v342 = vsel %vm196, %v66, 0
    %v345 = vsel %vm196, %v67, 0
    %v348 = vsel %vm196, %v68, 0
    %v351 = vsel %vm196, %v69, 0
    %v354 = vsel %vm196, %v70, 0
    %v357 = vsel %vm196, %v71, 0
    %v360 = vsel %vm196, %v72, 0
    %v363 = vsel %vm196, %v73, 0
    %v366 = vsel %vm196, %v74, 0
    %v369 = vsel %vm196, %v75, 0
    %v372 = vsel %vm196, %v76, 0
    %v375 = vsel %vm196, %v77, 0
    %v378 = vsel %vm196, %v78, 0
    %v381 = vsel %vm196, %v79, 0
    %v384 = vsel %vm196, %v80, 0
    %v387 = vsel %vm196, %v81, 0
    %v390 = vsel %vm196, %v82, 0
    %v393 = vsel %vm196, %v83, 0
    %v396 = vsel %vm196, %v84, 0
    %v399 = vsel %vm196, %v85, 0
    %v402 = vsel %vm196, %v86, 0
    %v405 = vsel %vm196, %v87, 0
    %v408 = vsel %vm196, %v88, 0
    %v411 = vsel %vm196, %v89, 0
    %v414 = vsel %vm196, %v90, 0
    %v417 = vsel %vm196, %v91, 0
    %v420 = vsel %vm196, %v92, 0
    %v423 = vsel %vm196, %v93, 0
    %v426 = vsel %vm196, %v94, 0
    %v429 = vsel %vm196, %v95, 0
    %v432 = vsel %vm196, %v96, 0
    %v435 = vsel %vm196, %v97, 0
    %v438 = vsel %vm196, %v98, 0
    %v441 = vsel %vm196, %v99, 0
    %v444 = vsel %vm196, %v100, 0
    %v447 = vsel %vm196, %v101, 0
    %v450 = vsel %vm196, %v102, 0
    %v453 = vsel %vm196, %v103, 0
    %v456 = vsel %vm196, %v104, 0
    %v459 = vsel %vm196, %v105, 0
    %v462 = vsel %vm196, %v106, 0
    %v465 = vsel %vm196, %v107, 0
    %v468 = vsel %vm196, %v108, 0
    %v471 = vsel %vm196, %v109, 0
    %v474 = vsel %vm196, %v110, 0
    %v477 = vsel %vm196, %v111, 0
    %v480 = vsel %vm196, %v112, 0
    %v483 = vsel %vm196, %v113, 0
    %v486 = vsel %vm196, %v114, 0
    %v489 = vsel %vm196, %v115, 0
    %v492 = vsel %vm196, %v116, 0
    %v495 = vsel %vm196, %v117, 0
    %v498 = vsel %vm196, %v118, 0
    %v501 = vsel %vm196, %v119, 0
    %v504 = vsel %vm196, %v120, 0
    %v507 = vsel %vm196, %v121, 0
    %v510 = vsel %vm196, %v122, 0
    %v513 = vsel %vm196, %v123, 0
    %v516 = vsel %vm196, %v124, 0
    %v519 = vsel %vm196, %v125, 0
    %v522 = vsel %vm196, %v126, 0
    %v525 = vsel %vm196, %v127, 0
    %v528 = vsel %vm196, %v128, 0
    %v531 = vsel %vm196, %v129, 0
    %v534 = vsel %vm196, %v130, 0
    %v537 = vsel %vm196, %v131, 0
    %v540 = vsel %vm196, %v132, 0
    %v543 = vsel %vm196, %v133, 0
    %v546 = vsel %vm196, %v134, 0
    %v549 = vsel %vm196, %v135, 0
    %v552 = vsel %vm196, %v136, 0
    %v555 = vsel %vm196, %v137, 0
    %v558 = vsel %vm196, %v138, 0
    %v561 = vsel %vm196, %v139, 0
    %v564 = vsel %vm196, %v140, 0
    %v567 = vsel %vm196, %v141, 0
    %v570 = vsel %vm196, %v142, 0
    %v573 = vsel %vm196, %v143, 0
    %v576 = vsel %vm196, %v144, 0
    %v579 = vsel %vm196, %v145, 0
    %v582 = vsel %vm196, %v146, 0
    %v585 = vsel %vm196, %v147, 0
    %v588 = vsel %vm196, %v148, 0
    %v591 = vsel %vm196, %v149, 0
    %v594 = vsel %vm196, %v150, 0
    %v597 = vsel %vm196, %v151, 0
    %v600 = vsel %vm196, %v152, 0
    %v603 = vsel %vm196, %v153, 0
    %v606 = vsel %vm196, %v154, 0
    %v609 = vsel %vm196, %v155, 0
    %v612 = vsel %vm196, %v156, 0
    %v615 = vsel %vm196, %v157, 0
    %v618 = vsel %vm196, %v158, 0
    %v621 = vsel %vm196, %v159, 0
    %v624 = vsel %vm196, %v160, 0
    %v627 = vsel %vm196, %v161, 0
    %v630 = vsel %vm196, %v162, 0
    %v633 = vsel %vm196, %v163, 0
    %v636 = vsel %vm196, %v164, 0
    %v639 = vsel %vm196, %v165, 0
    %v642 = vsel %vm196, %v166, 0
    %v645 = vsel %vm196, %v167, 0
    %v648 = vsel %vm196, %v168, 0
    %v651 = vsel %vm196, %v169, 0
    %v654 = vsel %vm196, %v170, 0
    %v657 = vsel %vm196, %v171, 0
    %659 = vmatprep.subr.mxu0 0.0
    %660 = vmatpush1.xpose.msra.mxu0 %v210
    %661 = vmatprep.subr.mxu0 0.0
    %662 = vmatpush1.xpose.msra.mxu0 %v213
    %663 = vmatprep.subr.mxu0 0.0
    %664 = vmatpush1.xpose.msra.mxu0 %v216
    %665 = vmatprep.subr.mxu0 0.0
    %666 = vmatpush1.xpose.msra.mxu0 %v219
    %667 = vmatprep.subr.mxu0 0.0
    %668 = vmatpush1.xpose.msra.mxu0 %v222
    %669 = vmatprep.subr.mxu0 0.0
    %670 = vmatpush1.xpose.msra.mxu0 %v225
    %671 = vmatprep.subr.mxu0 0.0
    %672 = vmatpush1.xpose.msra.mxu0 %v228
    %673 = vmatprep.subr.mxu0 0.0
    %674 = vmatpush1.xpose.msra.mxu0 %v231
    %675 = vmatprep.subr.mxu0 0.0
    %676 = vmatpush1.xpose.msra.mxu0 %v234
    %677 = vmatprep.subr.mxu0 0.0
    %678 = vmatpush1.xpose.msra.mxu0 %v237
    %679 = vmatprep.subr.mxu0 0.0
    %680 = vmatpush1.xpose.msra.mxu0 %v240
    %681 = vmatprep.subr.mxu0 0.0
    %682 = vmatpush1.xpose.msra.mxu0 %v243
    %683 = vmatprep.subr.mxu0 0.0
    %684 = vmatpush1.xpose.msra.mxu0 %v246
    %685 = vmatprep.subr.mxu0 0.0
    %686 = vmatpush1.xpose.msra.mxu0 %v249
    %687 = vmatprep.subr.mxu0 0.0
    %688 = vmatpush1.xpose.msra.mxu0 %v252
    %689 = vmatprep.subr.mxu0 0.0
    %690 = vmatpush1.xpose.msra.mxu0 %v255
    %691 = vmatprep.subr.mxu0 0.0
    %692 = vmatpush1.xpose.msra.mxu0 %v258
    %693 = vmatprep.subr.mxu0 0.0
    %694 = vmatpush1.xpose.msra.mxu0 %v261
    %695 = vmatprep.subr.mxu0 0.0
    %696 = vmatpush1.xpose.msra.mxu0 %v264
    %697 = vmatprep.subr.mxu0 0.0
    %698 = vmatpush1.xpose.msra.mxu0 %v267
    %699 = vmatprep.subr.mxu0 0.0
    %700 = vmatpush1.xpose.msra.mxu0 %v270
    %701 = vmatprep.subr.mxu0 0.0
    %702 = vmatpush1.xpose.msra.mxu0 %v273
    %703 = vmatprep.subr.mxu0 0.0
    %704 = vmatpush1.xpose.msra.mxu0 %v276
    %705 = vmatprep.subr.mxu0 0.0
    %706 = vmatpush1.xpose.msra.mxu0 %v279
    %707 = vmatprep.subr.mxu0 0.0
    %708 = vmatpush1.xpose.msra.mxu0 %v282
    %709 = vmatprep.subr.mxu0 0.0
    %710 = vmatpush1.xpose.msra.mxu0 %v285
    %711 = vmatprep.subr.mxu0 0.0
    %712 = vmatpush1.xpose.msra.mxu0 %v288
    %713 = vmatprep.subr.mxu0 0.0
    %714 = vmatpush1.xpose.msra.mxu0 %v291
    %715 = vmatprep.subr.mxu0 0.0
    %716 = vmatpush1.xpose.msra.mxu0 %v294
    %717 = vmatprep.subr.mxu0 0.0
    %718 = vmatpush1.xpose.msra.mxu0 %v297
    %719 = vmatprep.subr.mxu0 0.0
    %720 = vmatpush1.xpose.msra.mxu0 %v300
    %721 = vmatprep.subr.mxu0 0.0
    %722 = vmatpush1.xpose.msra.mxu0 %v303
    %723 = vmatprep.mubr.f32.mxu0 0.0
    %724 = vmatmul.mubr.f32.gmra.mrb[0].mxu0 %v198
    %v725 = vpop.f32.mrb[0].mxu0
    %v726 = vadd.f32 %v179, %v725
    %v727 = vpop.f32.mrb[0].mxu0
    %v728 = vadd.f32 %v179, %v727
    %729 = vmatprep.mubr.f32.mxu0 0.0
    %730 = vmatmul.mubr.f32.gmra.mrb[0].mxu0 %v201
    %v731 = vpop.f32.mrb[0].mxu0
    %v732 = vadd.f32 %v184, %v731
    %v733 = vpop.f32.mrb[0].mxu0
    %v734 = vadd.f32 %v184, %v733
    %735 = vmatprep.mubr.f32.mxu0 0.0
    %736 = vmatmul.mubr.f32.gmra.mrb[0].mxu0 %v204
    %v737 = vpop.f32.mrb[0].mxu0
    %v738 = vadd.f32 %v189, %v737
    %v739 = vpop.f32.mrb[0].mxu0
    %v740 = vadd.f32 %v189, %v739
    %741 = vmatprep.mubr.f32.mxu0 0.0
    %742 = vmatmul.mubr.f32.gmra.mrb[0].mxu0 %v207
    %v743 = vpop.f32.mrb[0].mxu0
    %v744 = vadd.f32 %v194, %v743
    %v745 = vpop.f32.mrb[0].mxu0
    %v746 = vadd.f32 %v194, %v745
    %747 = vdwg.mxu0
    %748 = vmatprep.subr.mxu0 0.0
    %749 = vmatpush1.xpose.msra.mxu0 %v306
    %750 = vmatprep.subr.mxu0 0.0
    %751 = vmatpush1.xpose.msra.mxu0 %v309
    %752 = vmatprep.subr.mxu0 0.0
    %753 = vmatpush1.xpose.msra.mxu0 %v312
    %754 = vmatprep.subr.mxu0 0.0
    %755 = vmatpush1.xpose.msra.mxu0 %v315
    %756 = vmatprep.subr.mxu0 0.0
    %757 = vmatpush1.xpose.msra.mxu0 %v318
    %758 = vmatprep.subr.mxu0 0.0
    %759 = vmatpush1.xpose.msra.mxu0 %v321
    %760 = vmatprep.subr.mxu0 0.0
    %761 = vmatpush1.xpose.msra.mxu0 %v324
    %762 = vmatprep.subr.mxu0 0.0
    %763 = vmatpush1.xpose.msra.mxu0 %v327
    %764 = vmatprep.subr.mxu0 0.0
    %765 = vmatpush1.xpose.msra.mxu0 %v330
    %766 = vmatprep.subr.mxu0 0.0
    %767 = vmatpush1.xpose.msra.mxu0 %v333
    %768 = vmatprep.subr.mxu0 0.0
    %769 = vmatpush1.xpose.msra.mxu0 %v336
    %770 = vmatprep.subr.mxu0 0.0
    %771 = vmatpush1.xpose.msra.mxu0 %v339
    %772 = vmatprep.subr.mxu0 0.0
    %773 = vmatpush1.xpose.msra.mxu0 %v342
    %774 = vmatprep.subr.mxu0 0.0
    %775 = vmatpush1.xpose.msra.mxu0 %v345
    %776 = vmatprep.subr.mxu0 0.0
    %777 = vmatpush1.xpose.msra.mxu0 %v348
    %778 = vmatprep.subr.mxu0 0.0
    %779 = vmatpush1.xpose.msra.mxu0 %v351
    %780 = vmatprep.subr.mxu0 0.0
    %781 = vmatpush1.xpose.msra.mxu0 %v354
    %782 = vmatprep.subr.mxu0 0.0
    %783 = vmatpush1.xpose.msra.mxu0 %v357
    %784 = vmatprep.subr.mxu0 0.0
    %785 = vmatpush1.xpose.msra.mxu0 %v360
    %786 = vmatprep.subr.mxu0 0.0
    %787 = vmatpush1.xpose.msra.mxu0 %v363
    %788 = vmatprep.subr.mxu0 0.0
    %789 = vmatpush1.xpose.msra.mxu0 %v366
    %790 = vmatprep.subr.mxu0 0.0
    %791 = vmatpush1.xpose.msra.mxu0 %v369
    %792 = vmatprep.subr.mxu0 0.0
    %793 = vmatpush1.xpose.msra.mxu0 %v372
    %794 = vmatprep.subr.mxu0 0.0
    %795 = vmatpush1.xpose.msra.mxu0 %v375
    %796 = vmatprep.subr.mxu0 0.0
    %797 = vmatpush1.xpose.msra.mxu0 %v378
    %798 = vmatprep.subr.mxu0 0.0
    %799 = vmatpush1.xpose.msra.mxu0 %v381
    %800 = vmatprep.subr.mxu0 0.0
    %801 = vmatpush1.xpose.msra.mxu0 %v384
    %802 = vmatprep.subr.mxu0 0.0
    %803 = vmatpush1.xpose.msra.mxu0 %v387
    %804 = vmatprep.subr.mxu0 0.0
    %805 = vmatpush1.xpose.msra.mxu0 %v390
    %806 = vmatprep.subr.mxu0 0.0
    %807 = vmatpush1.xpose.msra.mxu0 %v393
    %808 = vmatprep.subr.mxu0 0.0
    %809 = vmatpush1.xpose.msra.mxu0 %v396
    %810 = vmatprep.subr.mxu0 0.0
    %811 = vmatpush1.xpose.msra.mxu0 %v399
    %812 = vmatprep.mubr.f32.mxu0 0.0
    %813 = vmatmul.mubr.f32.gmra.mrb[0].mxu0 %v198
    %v814 = vpop.f32.mrb[0].mxu0
    %v815 = vadd.f32 %v179, %v814
    %v816 = vpop.f32.mrb[0].mxu0
    %v817 = vadd.f32 %v179, %v816
    %818 = vmatprep.mubr.f32.mxu0 0.0
    %819 = vmatmul.mubr.f32.gmra.mrb[0].mxu0 %v201
    %v820 = vpop.f32.mrb[0].mxu0
    %v821 = vadd.f32 %v184, %v820
    %v822 = vpop.f32.mrb[0].mxu0
    %v823 = vadd.f32 %v184, %v822
    %824 = vmatprep.mubr.f32.mxu0 0.0
    %825 = vmatmul.mubr.f32.gmra.mrb[0].mxu0 %v204
    %v826 = vpop.f32.mrb[0].mxu0
    %v827 = vadd.f32 %v189, %v826
    %v828 = vpop.f32.mrb[0].mxu0
    %v829 = vadd.f32 %v189, %v828
    %830 = vmatprep.mubr.f32.mxu0 0.0
    %831 = vmatmul.mubr.f32.gmra.mrb[0].mxu0 %v207
    %v832 = vpop.f32.mrb[0].mxu0
    %v833 = vadd.f32 %v194, %v832
    %v834 = vpop.f32.mrb[0].mxu0
    %v835 = vadd.f32 %v194, %v834
    %836 = vdwg.mxu0
    %837 = vmatprep.subr.mxu0 0.0
    %838 = vmatpush1.xpose.msra.mxu0 %v402
    %839 = vmatprep.subr.mxu0 0.0
    %840 = vmatpush1.xpose.msra.mxu0 %v405
    %841 = vmatprep.subr.mxu0 0.0
    %842 = vmatpush1.xpose.msra.mxu0 %v408
    %843 = vmatprep.subr.mxu0 0.0
    %844 = vmatpush1.xpose.msra.mxu0 %v411
    %845 = vmatprep.subr.mxu0 0.0
    %846 = vmatpush1.xpose.msra.mxu0 %v414
    %847 = vmatprep.subr.mxu0 0.0
    %848 = vmatpush1.xpose.msra.mxu0 %v417
    %849 = vmatprep.subr.mxu0 0.0
    %850 = vmatpush1.xpose.msra.mxu0 %v420
    %851 = vmatprep.subr.mxu0 0.0
    %852 = vmatpush1.xpose.msra.mxu0 %v423
    %853 = vmatprep.subr.mxu0 0.0
    %854 = vmatpush1.xpose.msra.mxu0 %v426
    %855 = vmatprep.subr.mxu0 0.0
    %856 = vmatpush1.xpose.msra.mxu0 %v429
    %857 = vmatprep.subr.mxu0 0.0
    %858 = vmatpush1.xpose.msra.mxu0 %v432
    %859 = vmatprep.subr.mxu0 0.0
    %860 = vmatpush1.xpose.msra.mxu0 %v435
    %861 = vmatprep.subr.mxu0 0.0
    %862 = vmatpush1.xpose.msra.mxu0 %v438
    %863 = vmatprep.subr.mxu0 0.0
    %864 = vmatpush1.xpose.msra.mxu0 %v441
    %865 = vmatprep.subr.mxu0 0.0
    %866 = vmatpush1.xpose.msra.mxu0 %v444
    %867 = vmatprep.subr.mxu0 0.0
    %868 = vmatpush1.xpose.msra.mxu0 %v447
    %869 = vmatprep.subr.mxu0 0.0
    %870 = vmatpush1.xpose.msra.mxu0 %v450
    %871 = vmatprep.subr.mxu0 0.0
    %872 = vmatpush1.xpose.msra.mxu0 %v453
    %873 = vmatprep.subr.mxu0 0.0
    %874 = vmatpush1.xpose.msra.mxu0 %v456
    %875 = vmatprep.subr.mxu0 0.0
    %876 = vmatpush1.xpose.msra.mxu0 %v459
    %877 = vmatprep.subr.mxu0 0.0
    %878 = vmatpush1.xpose.msra.mxu0 %v462
    %879 = vmatprep.subr.mxu0 0.0
    %880 = vmatpush1.xpose.msra.mxu0 %v465
    %881 = vmatprep.subr.mxu0 0.0
    %882 = vmatpush1.xpose.msra.mxu0 %v468
    %883 = vmatprep.subr.mxu0 0.0
    %884 = vmatpush1.xpose.msra.mxu0 %v471
    %885 = vmatprep.subr.mxu0 0.0
    %886 = vmatpush1.xpose.msra.mxu0 %v474
    %887 = vmatprep.subr.mxu0 0.0
    %888 = vmatpush1.xpose.msra.mxu0 %v477
    %889 = vmatprep.subr.mxu0 0.0
    %890 = vmatpush1.xpose.msra.mxu0 %v480
    %891 = vmatprep.subr.mxu0 0.0
    %892 = vmatpush1.xpose.msra.mxu0 %v483
    %893 = vmatprep.subr.mxu0 0.0
    %894 = vmatpush1.xpose.msra.mxu0 %v486
    %895 = vmatprep.subr.mxu0 0.0
    %896 = vmatpush1.xpose.msra.mxu0 %v489
    %897 = vmatprep.subr.mxu0 0.0
    %898 = vmatpush1.xpose.msra.mxu0 %v492
    %899 = vmatprep.subr.mxu0 0.0
    %900 = vmatpush1.xpose.msra.mxu0 %v495
    %901 = vmatprep.mubr.f32.mxu0 0.0
    %902 = vmatmul.mubr.f32.gmra.mrb[0].mxu0 %v198
    %v903 = vpop.f32.mrb[0].mxu0
    %v904 = vadd.f32 %v179, %v903
    %v905 = vpop.f32.mrb[0].mxu0
    %v906 = vadd.f32 %v179, %v905
    %907 = vmatprep.mubr.f32.mxu0 0.0
    %908 = vmatmul.mubr.f32.gmra.mrb[0].mxu0 %v201
    %v909 = vpop.f32.mrb[0].mxu0
    %v910 = vadd.f32 %v184, %v909
    %v911 = vpop.f32.mrb[0].mxu0
    %v912 = vadd.f32 %v184, %v911
    %913 = vmatprep.mubr.f32.mxu0 0.0
    %914 = vmatmul.mubr.f32.gmra.mrb[0].mxu0 %v204
    %v915 = vpop.f32.mrb[0].mxu0
    %v916 = vadd.f32 %v189, %v915
    %v917 = vpop.f32.mrb[0].mxu0
    %v918 = vadd.f32 %v189, %v917
    %919 = vmatprep.mubr.f32.mxu0 0.0
    %920 = vmatmul.mubr.f32.gmra.mrb[0].mxu0 %v207
    %v921 = vpop.f32.mrb[0].mxu0
    %v922 = vadd.f32 %v194, %v921
    %v923 = vpop.f32.mrb[0].mxu0
    %v924 = vadd.f32 %v194, %v923
    %925 = vdwg.mxu0
    %926 = vmatprep.subr.mxu0 0.0
    %927 = vmatpush1.xpose.msra.mxu0 %v498
    %928 = vmatprep.subr.mxu0 0.0
    %929 = vmatpush1.xpose.msra.mxu0 %v501
    %930 = vmatprep.subr.mxu0 0.0
    %931 = vmatpush1.xpose.msra.mxu0 %v504
    %932 = vmatprep.subr.mxu0 0.0
    %933 = vmatpush1.xpose.msra.mxu0 %v507
    %934 = vmatprep.subr.mxu0 0.0
    %935 = vmatpush1.xpose.msra.mxu0 %v510
    %936 = vmatprep.subr.mxu0 0.0
    %937 = vmatpush1.xpose.msra.mxu0 %v513
    %938 = vmatprep.subr.mxu0 0.0
    %939 = vmatpush1.xpose.msra.mxu0 %v516
    %940 = vmatprep.subr.mxu0 0.0
    %941 = vmatpush1.xpose.msra.mxu0 %v519
    %942 = vmatprep.subr.mxu0 0.0
    %943 = vmatpush1.xpose.msra.mxu0 %v522
    %944 = vmatprep.subr.mxu0 0.0
    %945 = vmatpush1.xpose.msra.mxu0 %v525
    %946 = vmatprep.subr.mxu0 0.0
    %947 = vmatpush1.xpose.msra.mxu0 %v528
    %948 = vmatprep.subr.mxu0 0.0
    %949 = vmatpush1.xpose.msra.mxu0 %v531
    %950 = vmatprep.subr.mxu0 0.0
    %951 = vmatpush1.xpose.msra.mxu0 %v534
    %952 = vmatprep.subr.mxu0 0.0
    %953 = vmatpush1.xpose.msra.mxu0 %v537
    %954 = vmatprep.subr.mxu0 0.0
    %955 = vmatpush1.xpose.msra.mxu0 %v540
    %956 = vmatprep.subr.mxu0 0.0
    %957 = vmatpush1.xpose.msra.mxu0 %v543
    %958 = vmatprep.subr.mxu0 0.0
    %959 = vmatpush1.xpose.msra.mxu0 %v546
    %960 = vmatprep.subr.mxu0 0.0
    %961 = vmatpush1.xpose.msra.mxu0 %v549
    %962 = vmatprep.subr.mxu0 0.0
    %963 = vmatpush1.xpose.msra.mxu0 %v552
    %964 = vmatprep.subr.mxu0 0.0
    %965 = vmatpush1.xpose.msra.mxu0 %v555
    %966 = vmatprep.subr.mxu0 0.0
    %967 = vmatpush1.xpose.msra.mxu0 %v558
    %968 = vmatprep.subr.mxu0 0.0
    %969 = vmatpush1.xpose.msra.mxu0 %v561
    %970 = vmatprep.subr.mxu0 0.0
    %971 = vmatpush1.xpose.msra.mxu0 %v564
    %972 = vmatprep.subr.mxu0 0.0
    %973 = vmatpush1.xpose.msra.mxu0 %v567
    %974 = vmatprep.subr.mxu0 0.0
    %975 = vmatpush1.xpose.msra.mxu0 %v570
    %976 = vmatprep.subr.mxu0 0.0
    %977 = vmatpush1.xpose.msra.mxu0 %v573
    %978 = vmatprep.subr.mxu0 0.0
    %979 = vmatpush1.xpose.msra.mxu0 %v576
    %980 = vmatprep.subr.mxu0 0.0
    %981 = vmatpush1.xpose.msra.mxu0 %v579
    %982 = vmatprep.subr.mxu0 0.0
    %983 = vmatpush1.xpose.msra.mxu0 %v582
    %984 = vmatprep.subr.mxu0 0.0
    %985 = vmatpush1.xpose.msra.mxu0 %v585
    %986 = vmatprep.subr.mxu0 0.0
    %987 = vmatpush1.xpose.msra.mxu0 %v588
    %988 = vmatprep.subr.mxu0 0.0
    %989 = vmatpush1.xpose.msra.mxu0 %v591
    %990 = vmatprep.mubr.f32.mxu0 0.0
    %991 = vmatmul.mubr.f32.gmra.mrb[0].mxu0 %v198
    %v992 = vpop.f32.mrb[0].mxu0
    %v993 = vadd.f32 %v179, %v992
    %v994 = vpop.f32.mrb[0].mxu0
    %v995 = vadd.f32 %v179, %v994
    %996 = vmatprep.mubr.f32.mxu0 0.0
    %997 = vmatmul.mubr.f32.gmra.mrb[0].mxu0 %v201
    %v998 = vpop.f32.mrb[0].mxu0
    %v999 = vadd.f32 %v184, %v998
    %v1000 = vpop.f32.mrb[0].mxu0
    %v1001 = vadd.f32 %v184, %v1000
    %1002 = vmatprep.mubr.f32.mxu0 0.0
    %1003 = vmatmul.mubr.f32.gmra.mrb[0].mxu0 %v204
    %v1004 = vpop.f32.mrb[0].mxu0
    %v1005 = vadd.f32 %v189, %v1004
    %v1006 = vpop.f32.mrb[0].mxu0
    %v1007 = vadd.f32 %v189, %v1006
    %1008 = vmatprep.mubr.f32.mxu0 0.0
    %1009 = vmatmul.mubr.f32.gmra.mrb[0].mxu0 %v207
    %v1010 = vpop.f32.mrb[0].mxu0
    %v1011 = vadd.f32 %v194, %v1010
    %v1012 = vpop.f32.mrb[0].mxu0
    %v1013 = vadd.f32 %v194, %v1012
    %1014 = vdwg.mxu0
    %1015 = vmatprep.subr.mxu0 0.0
    %1016 = vmatpush1.xpose.msra.mxu0 %v594
    %1017 = vmatprep.subr.mxu0 0.0
    %1018 = vmatpush1.xpose.msra.mxu0 %v597
    %1019 = vmatprep.subr.mxu0 0.0
    %1020 = vmatpush1.xpose.msra.mxu0 %v600
    %1021 = vmatprep.subr.mxu0 0.0
    %1022 = vmatpush1.xpose.msra.mxu0 %v603
    %1023 = vmatprep.subr.mxu0 0.0
    %1024 = vmatpush1.xpose.msra.mxu0 %v606
    %1025 = vmatprep.subr.mxu0 0.0
    %1026 = vmatpush1.xpose.msra.mxu0 %v609
    %1027 = vmatprep.subr.mxu0 0.0
    %1028 = vmatpush1.xpose.msra.mxu0 %v612
    %1029 = vmatprep.subr.mxu0 0.0
    %1030 = vmatpush1.xpose.msra.mxu0 %v615
    %1031 = vmatprep.subr.mxu0 0.0
    %1032 = vmatpush1.xpose.msra.mxu0 %v618
    %1033 = vmatprep.subr.mxu0 0.0
    %1034 = vmatpush1.xpose.msra.mxu0 %v621
    %1035 = vmatprep.subr.mxu0 0.0
    %1036 = vmatpush1.xpose.msra.mxu0 %v624
    %1037 = vmatprep.subr.mxu0 0.0
    %1038 = vmatpush1.xpose.msra.mxu0 %v627
    %1039 = vmatprep.subr.mxu0 0.0
    %1040 = vmatpush1.xpose.msra.mxu0 %v630
    %1041 = vmatprep.subr.mxu0 0.0
    %1042 = vmatpush1.xpose.msra.mxu0 %v633
    %1043 = vmatprep.subr.mxu0 0.0
    %1044 = vmatpush1.xpose.msra.mxu0 %v636
    %1045 = vmatprep.subr.mxu0 0.0
    %1046 = vmatpush1.xpose.msra.mxu0 %v639
    %1047 = vmatprep.subr.mxu0 0.0
    %1048 = vmatpush1.xpose.msra.mxu0 %v642
    %1049 = vmatprep.subr.mxu0 0.0
    %1050 = vmatpush1.xpose.msra.mxu0 %v645
    %1051 = vmatprep.subr.mxu0 0.0
    %1052 = vmatpush1.xpose.msra.mxu0 %v648
    %1053 = vmatprep.subr.mxu0 0.0
    %1054 = vmatpush1.xpose.msra.mxu0 %v651
    %1055 = vmatprep.subr.mxu0 0.0
    %1056 = vmatpush1.xpose.msra.mxu0 %v654
    %1057 = vmatprep.subr.mxu0 0.0
    %1058 = vmatpush1.xpose.msra.mxu0 %v657
    %1059 = vmatprep.subr.mxu0 0.0
    %1060 = vmatpush1.xpose.msra.mxu0 0.0
    %1061 = vmatprep.subr.mxu0 0.0
    %1062 = vmatpush1.xpose.msra.mxu0 0.0
    %1063 = vmatprep.subr.mxu0 0.0
    %1064 = vmatpush1.xpose.msra.mxu0 0.0
    %1065 = vmatprep.subr.mxu0 0.0
    %1066 = vmatpush1.xpose.msra.mxu0 0.0
    %1067 = vmatprep.subr.mxu0 0.0
    %1068 = vmatpush1.xpose.msra.mxu0 0.0
    %1069 = vmatprep.subr.mxu0 0.0
    %1070 = vmatpush1.xpose.msra.mxu0 0.0
    %1071 = vmatprep.subr.mxu0 0.0
    %1072 = vmatpush1.xpose.msra.mxu0 0.0
    %1073 = vmatprep.subr.mxu0 0.0
    %1074 = vmatpush1.xpose.msra.mxu0 0.0
    %1075 = vmatprep.subr.mxu0 0.0
    %1076 = vmatpush1.xpose.msra.mxu0 0.0
    %1077 = vmatprep.subr.mxu0 0.0
    %1078 = vmatpush1.xpose.msra.mxu0 0.0
    %1079 = vmatprep.mubr.f32.mxu0 0.0
    %1080 = vmatmul.mubr.f32.gmra.mrb[0].mxu0 %v198
    %v1081 = vpop.f32.mrb[0].mxu0
    %v1082 = vadd.f32 %v179, %v1081
    %v1083 = vpop.f32.mrb[0].mxu0
    %v1084 = vadd.f32 %v179, %v1083
    %1085 = vmatprep.mubr.f32.mxu0 0.0
    %1086 = vmatmul.mubr.f32.gmra.mrb[0].mxu0 %v201
    %v1087 = vpop.f32.mrb[0].mxu0
    %v1088 = vadd.f32 %v184, %v1087
    %v1089 = vpop.f32.mrb[0].mxu0
    %v1090 = vadd.f32 %v184, %v1089
    %1091 = vmatprep.mubr.f32.mxu0 0.0
    %1092 = vmatmul.mubr.f32.gmra.mrb[0].mxu0 %v204
    %v1093 = vpop.f32.mrb[0].mxu0
    %v1094 = vadd.f32 %v189, %v1093
    %v1095 = vpop.f32.mrb[0].mxu0
    %v1096 = vadd.f32 %v189, %v1095
    %1097 = vmatprep.mubr.f32.mxu0 0.0
    %1098 = vmatmul.mubr.f32.gmra.mrb[0].mxu0 %v207
    %v1099 = vpop.f32.mrb[0].mxu0
    %v1100 = vadd.f32 %v194, %v1099
    %v1101 = vpop.f32.mrb[0].mxu0
    %v1102 = vadd.f32 %v194, %v1101
    %1103 = vdwg.mxu0
    %v1104 = vmax.f32 %v726, 0.0
    %v1105 = vmax.f32 %v728, 0.0
    %v1106 = vmax.f32 %v815, 0.0
    %v1107 = vmax.f32 %v817, 0.0
    %v1108 = vmax.f32 %v904, 0.0
    %v1109 = vmax.f32 %v906, 0.0
    %v1110 = vmax.f32 %v993, 0.0
    %v1111 = vmax.f32 %v995, 0.0
    %v1112 = vmax.f32 %v1082, 0.0
    %v1113 = vmax.f32 %v1084, 0.0
    %v1114 = vmax.f32 %v732, 0.0
    %v1115 = vmax.f32 %v734, 0.0
    %v1116 = vmax.f32 %v821, 0.0
    %v1117 = vmax.f32 %v823, 0.0
    %v1118 = vmax.f32 %v910, 0.0
    %v1119 = vmax.f32 %v912, 0.0
    %v1120 = vmax.f32 %v999, 0.0
    %v1121 = vmax.f32 %v1001, 0.0
    %v1122 = vmax.f32 %v1088, 0.0
    %v1123 = vmax.f32 %v1090, 0.0
    %v1124 = vmax.f32 %v738, 0.0
    %v1125 = vmax.f32 %v740, 0.0
    %v1126 = vmax.f32 %v827, 0.0
    %v1127 = vmax.f32 %v829, 0.0
    %v1128 = vmax.f32 %v916, 0.0
    %v1129 = vmax.f32 %v918, 0.0
    %v1130 = vmax.f32 %v1005, 0.0
    %v1131 = vmax.f32 %v1007, 0.0
    %v1132 = vmax.f32 %v1094, 0.0
    %v1133 = vmax.f32 %v1096, 0.0
    %v1134 = vmax.f32 %v744, 0.0
    %v1135 = vmax.f32 %v746, 0.0
    %v1136 = vmax.f32 %v833, 0.0
    %v1137 = vmax.f32 %v835, 0.0
    %v1138 = vmax.f32 %v922, 0.0
    %v1139 = vmax.f32 %v924, 0.0
    %v1140 = vmax.f32 %v1011, 0.0
    %v1141 = vmax.f32 %v1013, 0.0
    %v1142 = vmax.f32 %v1100, 0.0
    %v1143 = vmax.f32 %v1102, 0.0
    %v1144 = vld [vmem:[%s2] sm:$0xff]
    %v1145 = vld [vmem:[%s2 + $0x8] sm:$0xff]
    %v1146 = vld [vmem:[%s2 + $0x10] sm:$0xff]
    %v1147 = vld [vmem:[%s2 + $0x18] sm:$0xff]
    %v1148 = vld [vmem:[%s3 + $0x20] sm:$0xff]
    %v1149 = vld [vmem:[%s3 + $0x28] sm:$0xff]
    %v1150 = vld [vmem:[%s3 + $0x30] sm:$0xff]
    %v1151 = vld [vmem:[%s3 + $0x38] sm:$0xff]
    %1153 = vset.pattern.permute.xlu0 0
    %1154 = vperm.xlu0 %1153, %v1148
    %v1155 = vpop.permute.xlu0 %1154
    %1158 = vset.pattern.permute.xlu0 0
    %1159 = vperm.xlu0 %1158, %v1149
    %v1160 = vpop.permute.xlu0 %1159
    %1163 = vset.pattern.permute.xlu0 0
    %1164 = vperm.xlu0 %1163, %v1150
    %v1165 = vpop.permute.xlu0 %1164
    %1168 = vset.pattern.permute.xlu0 0
    %1169 = vperm.xlu0 %1168, %v1151
    %v1170 = vpop.permute.xlu0 %1169
    %vm1172 = vcmask 261120
    %v1174 = vsel %vm1172, %v1144, 0
    %v1177 = vsel %vm1172, %v1145, 0
    %v1180 = vsel %vm1172, %v1146, 0
    %v1183 = vsel %vm1172, %v1147, 0
    %1185 = vmatprep.subr.mxu0 %v1105
    %1186 = vmatpush1.msra.mxu0 %v1104
    %1187 = vmatprep.subr.mxu0 %v1115
    %1188 = vmatpush1.msra.mxu0 %v1114
    %1189 = vmatprep.subr.mxu0 %v1125
    %1190 = vmatpush1.msra.mxu0 %v1124
    %1191 = vmatprep.subr.mxu0 %v1135
    %1192 = vmatpush1.msra.mxu0 %v1134
    %1193 = vmatprep.subr.mxu0 0.0
    %1194 = vmatpush1.msra.mxu0 0.0
    %1195 = vmatprep.subr.mxu0 0.0
    %1196 = vmatpush1.msra.mxu0 0.0
    %1197 = vmatprep.subr.mxu0 0.0
    %1198 = vmatpush1.msra.mxu0 0.0
    %1199 = vmatprep.subr.mxu0 0.0
    %1200 = vmatpush1.msra.mxu0 0.0
    %1201 = vmatprep.subr.mxu0 0.0
    %1202 = vmatpush1.msra.mxu0 0.0
    %1203 = vmatprep.subr.mxu0 0.0
    %1204 = vmatpush1.msra.mxu0 0.0
    %1205 = vmatprep.subr.mxu0 0.0
    %1206 = vmatpush1.msra.mxu0 0.0
    %1207 = vmatprep.subr.mxu0 0.0
    %1208 = vmatpush1.msra.mxu0 0.0
    %1209 = vmatprep.subr.mxu0 0.0
    %1210 = vmatpush1.msra.mxu0 0.0
    %1211 = vmatprep.subr.mxu0 0.0
    %1212 = vmatpush1.msra.mxu0 0.0
    %1213 = vmatprep.subr.mxu0 0.0
    %1214 = vmatpush1.msra.mxu0 0.0
    %1215 = vmatprep.subr.mxu0 0.0
    %1216 = vmatpush1.msra.mxu0 0.0
    %1217 = vmatprep.subr.mxu0 0.0
    %1218 = vmatpush1.msra.mxu0 0.0
    %1219 = vmatprep.subr.mxu0 0.0
    %1220 = vmatpush1.msra.mxu0 0.0
    %1221 = vmatprep.subr.mxu0 0.0
    %1222 = vmatpush1.msra.mxu0 0.0
    %1223 = vmatprep.subr.mxu0 0.0
    %1224 = vmatpush1.msra.mxu0 0.0
    %1225 = vmatprep.subr.mxu0 0.0
    %1226 = vmatpush1.msra.mxu0 0.0
    %1227 = vmatprep.subr.mxu0 0.0
    %1228 = vmatpush1.msra.mxu0 0.0
    %1229 = vmatprep.subr.mxu0 0.0
    %1230 = vmatpush1.msra.mxu0 0.0
    %1231 = vmatprep.subr.mxu0 0.0
    %1232 = vmatpush1.msra.mxu0 0.0
    %1233 = vmatprep.subr.mxu0 0.0
    %1234 = vmatpush1.msra.mxu0 0.0
    %1235 = vmatprep.subr.mxu0 0.0
    %1236 = vmatpush1.msra.mxu0 0.0
    %1237 = vmatprep.subr.mxu0 0.0
    %1238 = vmatpush1.msra.mxu0 0.0
    %1239 = vmatprep.subr.mxu0 0.0
    %1240 = vmatpush1.msra.mxu0 0.0
    %1241 = vmatprep.subr.mxu0 0.0
    %1242 = vmatpush1.msra.mxu0 0.0
    %1243 = vmatprep.subr.mxu0 0.0
    %1244 = vmatpush1.msra.mxu0 0.0
    %1245 = vmatprep.subr.mxu0 0.0
    %1246 = vmatpush1.msra.mxu0 0.0
    %1247 = vmatprep.subr.mxu0 0.0
    %1248 = vmatpush1.msra.mxu0 0.0
    %1249 = vmatprep.mubr.f32.mxu0 0.0
    %1250 = vmatmul.mubr.f32.gmra.mrb[0].mxu0 %v1174
    %v1251 = vpop.f32.mrb[0].mxu0
    %v1252 = vadd.f32 %v1155, %v1251
    %v1253 = vpop.f32.mrb[0].mxu0
    %v1254 = vadd.f32 %v1155, %v1253
    %1255 = vmatprep.mubr.f32.mxu0 0.0
    %1256 = vmatmul.mubr.f32.gmra.mrb[0].mxu0 %v1177
    %v1257 = vpop.f32.mrb[0].mxu0
    %v1258 = vadd.f32 %v1160, %v1257
    %v1259 = vpop.f32.mrb[0].mxu0
    %v1260 = vadd.f32 %v1160, %v1259
    %1261 = vmatprep.mubr.f32.mxu0 0.0
    %1262 = vmatmul.mubr.f32.gmra.mrb[0].mxu0 %v1180
    %v1263 = vpop.f32.mrb[0].mxu0
    %v1264 = vadd.f32 %v1165, %v1263
    %v1265 = vpop.f32.mrb[0].mxu0
    %v1266 = vadd.f32 %v1165, %v1265
    %1267 = vmatprep.mubr.f32.mxu0 0.0
    %1268 = vmatmul.mubr.f32.gmra.mrb[0].mxu0 %v1183
    %v1269 = vpop.f32.mrb[0].mxu0
    %v1270 = vadd.f32 %v1170, %v1269
    %v1271 = vpop.f32.mrb[0].mxu0
    %v1272 = vadd.f32 %v1170, %v1271
    %1273 = vdwg.mxu0
    %1274 = vmatprep.subr.mxu0 %v1107
    %1275 = vmatpush1.msra.mxu0 %v1106
    %1276 = vmatprep.subr.mxu0 %v1117
    %1277 = vmatpush1.msra.mxu0 %v1116
    %1278 = vmatprep.subr.mxu0 %v1127
    %1279 = vmatpush1.msra.mxu0 %v1126
    %1280 = vmatprep.subr.mxu0 %v1137
    %1281 = vmatpush1.msra.mxu0 %v1136
    %1282 = vmatprep.subr.mxu0 0.0
    %1283 = vmatpush1.msra.mxu0 0.0
    %1284 = vmatprep.subr.mxu0 0.0
    %1285 = vmatpush1.msra.mxu0 0.0
    %1286 = vmatprep.subr.mxu0 0.0
    %1287 = vmatpush1.msra.mxu0 0.0
    %1288 = vmatprep.subr.mxu0 0.0
    %1289 = vmatpush1.msra.mxu0 0.0
    %1290 = vmatprep.subr.mxu0 0.0
    %1291 = vmatpush1.msra.mxu0 0.0
    %1292 = vmatprep.subr.mxu0 0.0
    %1293 = vmatpush1.msra.mxu0 0.0
    %1294 = vmatprep.subr.mxu0 0.0
    %1295 = vmatpush1.msra.mxu0 0.0
    %1296 = vmatprep.subr.mxu0 0.0
    %1297 = vmatpush1.msra.mxu0 0.0
    %1298 = vmatprep.subr.mxu0 0.0
    %1299 = vmatpush1.msra.mxu0 0.0
    %1300 = vmatprep.subr.mxu0 0.0
    %1301 = vmatpush1.msra.mxu0 0.0
    %1302 = vmatprep.subr.mxu0 0.0
    %1303 = vmatpush1.msra.mxu0 0.0
    %1304 = vmatprep.subr.mxu0 0.0
    %1305 = vmatpush1.msra.mxu0 0.0
    %1306 = vmatprep.subr.mxu0 0.0
    %1307 = vmatpush1.msra.mxu0 0.0
    %1308 = vmatprep.subr.mxu0 0.0
    %1309 = vmatpush1.msra.mxu0 0.0
    %1310 = vmatprep.subr.mxu0 0.0
    %1311 = vmatpush1.msra.mxu0 0.0
    %1312 = vmatprep.subr.mxu0 0.0
    %1313 = vmatpush1.msra.mxu0 0.0
    %1314 = vmatprep.subr.mxu0 0.0
    %1315 = vmatpush1.msra.mxu0 0.0
    %1316 = vmatprep.subr.mxu0 0.0
    %1317 = vmatpush1.msra.mxu0 0.0
    %1318 = vmatprep.subr.mxu0 0.0
    %1319 = vmatpush1.msra.mxu0 0.0
    %1320 = vmatprep.subr.mxu0 0.0
    %1321 = vmatpush1.msra.mxu0 0.0
    %1322 = vmatprep.subr.mxu0 0.0
    %1323 = vmatpush1.msra.mxu0 0.0
    %1324 = vmatprep.subr.mxu0 0.0
    %1325 = vmatpush1.msra.mxu0 0.0
    %1326 = vmatprep.subr.mxu0 0.0
    %1327 = vmatpush1.msra.mxu0 0.0
    %1328 = vmatprep.subr.mxu0 0.0
    %1329 = vmatpush1.msra.mxu0 0.0
    %1330 = vmatprep.subr.mxu0 0.0
    %1331 = vmatpush1.msra.mxu0 0.0
    %1332 = vmatprep.subr.mxu0 0.0
    %1333 = vmatpush1.msra.mxu0 0.0
    %1334 = vmatprep.subr.mxu0 0.0
    %1335 = vmatpush1.msra.mxu0 0.0
    %1336 = vmatprep.subr.mxu0 0.0
    %1337 = vmatpush1.msra.mxu0 0.0
    %1338 = vmatprep.mubr.f32.mxu0 0.0
    %1339 = vmatmul.mubr.f32.gmra.mrb[0].mxu0 %v1174
    %v1340 = vpop.f32.mrb[0].mxu0
    %v1341 = vadd.f32 %v1155, %v1340
    %v1342 = vpop.f32.mrb[0].mxu0
    %v1343 = vadd.f32 %v1155, %v1342
    %1344 = vmatprep.mubr.f32.mxu0 0.0
    %1345 = vmatmul.mubr.f32.gmra.mrb[0].mxu0 %v1177
    %v1346 = vpop.f32.mrb[0].mxu0
    %v1347 = vadd.f32 %v1160, %v1346
    %v1348 = vpop.f32.mrb[0].mxu0
    %v1349 = vadd.f32 %v1160, %v1348
    %1350 = vmatprep.mubr.f32.mxu0 0.0
    %1351 = vmatmul.mubr.f32.gmra.mrb[0].mxu0 %v1180
    %v1352 = vpop.f32.mrb[0].mxu0
    %v1353 = vadd.f32 %v1165, %v1352
    %v1354 = vpop.f32.mrb[0].mxu0
    %v1355 = vadd.f32 %v1165, %v1354
    %1356 = vmatprep.mubr.f32.mxu0 0.0
    %1357 = vmatmul.mubr.f32.gmra.mrb[0].mxu0 %v1183
    %v1358 = vpop.f32.mrb[0].mxu0
    %v1359 = vadd.f32 %v1170, %v1358
    %v1360 = vpop.f32.mrb[0].mxu0
    %v1361 = vadd.f32 %v1170, %v1360
    %1362 = vdwg.mxu0
    %1363 = vmatprep.subr.mxu0 %v1109
    %1364 = vmatpush1.msra.mxu0 %v1108
    %1365 = vmatprep.subr.mxu0 %v1119
    %1366 = vmatpush1.msra.mxu0 %v1118
    %1367 = vmatprep.subr.mxu0 %v1129
    %1368 = vmatpush1.msra.mxu0 %v1128
    %1369 = vmatprep.subr.mxu0 %v1139
    %1370 = vmatpush1.msra.mxu0 %v1138
    %1371 = vmatprep.subr.mxu0 0.0
    %1372 = vmatpush1.msra.mxu0 0.0
    %1373 = vmatprep.subr.mxu0 0.0
    %1374 = vmatpush1.msra.mxu0 0.0
    %1375 = vmatprep.subr.mxu0 0.0
    %1376 = vmatpush1.msra.mxu0 0.0
    %1377 = vmatprep.subr.mxu0 0.0
    %1378 = vmatpush1.msra.mxu0 0.0
    %1379 = vmatprep.subr.mxu0 0.0
    %1380 = vmatpush1.msra.mxu0 0.0
    %1381 = vmatprep.subr.mxu0 0.0
    %1382 = vmatpush1.msra.mxu0 0.0
    %1383 = vmatprep.subr.mxu0 0.0
    %1384 = vmatpush1.msra.mxu0 0.0
    %1385 = vmatprep.subr.mxu0 0.0
    %1386 = vmatpush1.msra.mxu0 0.0
    %1387 = vmatprep.subr.mxu0 0.0
    %1388 = vmatpush1.msra.mxu0 0.0
    %1389 = vmatprep.subr.mxu0 0.0
    %1390 = vmatpush1.msra.mxu0 0.0
    %1391 = vmatprep.subr.mxu0 0.0
    %1392 = vmatpush1.msra.mxu0 0.0
    %1393 = vmatprep.subr.mxu0 0.0
    %1394 = vmatpush1.msra.mxu0 0.0
    %1395 = vmatprep.subr.mxu0 0.0
    %1396 = vmatpush1.msra.mxu0 0.0
    %1397 = vmatprep.subr.mxu0 0.0
    %1398 = vmatpush1.msra.mxu0 0.0
    %1399 = vmatprep.subr.mxu0 0.0
    %1400 = vmatpush1.msra.mxu0 0.0
    %1401 = vmatprep.subr.mxu0 0.0
    %1402 = vmatpush1.msra.mxu0 0.0
    %1403 = vmatprep.subr.mxu0 0.0
    %1404 = vmatpush1.msra.mxu0 0.0
    %1405 = vmatprep.subr.mxu0 0.0
    %1406 = vmatpush1.msra.mxu0 0.0
    %1407 = vmatprep.subr.mxu0 0.0
    %1408 = vmatpush1.msra.mxu0 0.0
    %1409 = vmatprep.subr.mxu0 0.0
    %1410 = vmatpush1.msra.mxu0 0.0
    %1411 = vmatprep.subr.mxu0 0.0
    %1412 = vmatpush1.msra.mxu0 0.0
    %1413 = vmatprep.subr.mxu0 0.0
    %1414 = vmatpush1.msra.mxu0 0.0
    %1415 = vmatprep.subr.mxu0 0.0
    %1416 = vmatpush1.msra.mxu0 0.0
    %1417 = vmatprep.subr.mxu0 0.0
    %1418 = vmatpush1.msra.mxu0 0.0
    %1419 = vmatprep.subr.mxu0 0.0
    %1420 = vmatpush1.msra.mxu0 0.0
    %1421 = vmatprep.subr.mxu0 0.0
    %1422 = vmatpush1.msra.mxu0 0.0
    %1423 = vmatprep.subr.mxu0 0.0
    %1424 = vmatpush1.msra.mxu0 0.0
    %1425 = vmatprep.subr.mxu0 0.0
    %1426 = vmatpush1.msra.mxu0 0.0
    %1427 = vmatprep.mubr.f32.mxu0 0.0
    %1428 = vmatmul.mubr.f32.gmra.mrb[0].mxu0 %v1174
    %v1429 = vpop.f32.mrb[0].mxu0
    %v1430 = vadd.f32 %v1155, %v1429
    %v1431 = vpop.f32.mrb[0].mxu0
    %v1432 = vadd.f32 %v1155, %v1431
    %1433 = vmatprep.mubr.f32.mxu0 0.0
    %1434 = vmatmul.mubr.f32.gmra.mrb[0].mxu0 %v1177
    %v1435 = vpop.f32.mrb[0].mxu0
    %v1436 = vadd.f32 %v1160, %v1435
    %v1437 = vpop.f32.mrb[0].mxu0
    %v1438 = vadd.f32 %v1160, %v1437
    %1439 = vmatprep.mubr.f32.mxu0 0.0
    %1440 = vmatmul.mubr.f32.gmra.mrb[0].mxu0 %v1180
    %v1441 = vpop.f32.mrb[0].mxu0
    %v1442 = vadd.f32 %v1165, %v1441
    %v1443 = vpop.f32.mrb[0].mxu0
    %v1444 = vadd.f32 %v1165, %v1443
    %1445 = vmatprep.mubr.f32.mxu0 0.0
    %1446 = vmatmul.mubr.f32.gmra.mrb[0].mxu0 %v1183
    %v1447 = vpop.f32.mrb[0].mxu0
    %v1448 = vadd.f32 %v1170, %v1447
    %v1449 = vpop.f32.mrb[0].mxu0
    %v1450 = vadd.f32 %v1170, %v1449
    %1451 = vdwg.mxu0
    %1452 = vmatprep.subr.mxu0 %v1111
    %1453 = vmatpush1.msra.mxu0 %v1110
    %1454 = vmatprep.subr.mxu0 %v1121
    %1455 = vmatpush1.msra.mxu0 %v1120
    %1456 = vmatprep.subr.mxu0 %v1131
    %1457 = vmatpush1.msra.mxu0 %v1130
    %1458 = vmatprep.subr.mxu0 %v1141
    %1459 = vmatpush1.msra.mxu0 %v1140
    %1460 = vmatprep.subr.mxu0 0.0
    %1461 = vmatpush1.msra.mxu0 0.0
    %1462 = vmatprep.subr.mxu0 0.0
    %1463 = vmatpush1.msra.mxu0 0.0
    %1464 = vmatprep.subr.mxu0 0.0
    %1465 = vmatpush1.msra.mxu0 0.0
    %1466 = vmatprep.subr.mxu0 0.0
    %1467 = vmatpush1.msra.mxu0 0.0
    %1468 = vmatprep.subr.mxu0 0.0
    %1469 = vmatpush1.msra.mxu0 0.0
    %1470 = vmatprep.subr.mxu0 0.0
    %1471 = vmatpush1.msra.mxu0 0.0
    %1472 = vmatprep.subr.mxu0 0.0
    %1473 = vmatpush1.msra.mxu0 0.0
    %1474 = vmatprep.subr.mxu0 0.0
    %1475 = vmatpush1.msra.mxu0 0.0
    %1476 = vmatprep.subr.mxu0 0.0
    %1477 = vmatpush1.msra.mxu0 0.0
    %1478 = vmatprep.subr.mxu0 0.0
    %1479 = vmatpush1.msra.mxu0 0.0
    %1480 = vmatprep.subr.mxu0 0.0
    %1481 = vmatpush1.msra.mxu0 0.0
    %1482 = vmatprep.subr.mxu0 0.0
    %1483 = vmatpush1.msra.mxu0 0.0
    %1484 = vmatprep.subr.mxu0 0.0
    %1485 = vmatpush1.msra.mxu0 0.0
    %1486 = vmatprep.subr.mxu0 0.0
    %1487 = vmatpush1.msra.mxu0 0.0
    %1488 = vmatprep.subr.mxu0 0.0
    %1489 = vmatpush1.msra.mxu0 0.0
    %1490 = vmatprep.subr.mxu0 0.0
    %1491 = vmatpush1.msra.mxu0 0.0
    %1492 = vmatprep.subr.mxu0 0.0
    %1493 = vmatpush1.msra.mxu0 0.0
    %1494 = vmatprep.subr.mxu0 0.0
    %1495 = vmatpush1.msra.mxu0 0.0
    %1496 = vmatprep.subr.mxu0 0.0
    %1497 = vmatpush1.msra.mxu0 0.0
    %1498 = vmatprep.subr.mxu0 0.0
    %1499 = vmatpush1.msra.mxu0 0.0
    %1500 = vmatprep.subr.mxu0 0.0
    %1501 = vmatpush1.msra.mxu0 0.0
    %1502 = vmatprep.subr.mxu0 0.0
    %1503 = vmatpush1.msra.mxu0 0.0
    %1504 = vmatprep.subr.mxu0 0.0
    %1505 = vmatpush1.msra.mxu0 0.0
    %1506 = vmatprep.subr.mxu0 0.0
    %1507 = vmatpush1.msra.mxu0 0.0
    %1508 = vmatprep.subr.mxu0 0.0
    %1509 = vmatpush1.msra.mxu0 0.0
    %1510 = vmatprep.subr.mxu0 0.0
    %1511 = vmatpush1.msra.mxu0 0.0
    %1512 = vmatprep.subr.mxu0 0.0
    %1513 = vmatpush1.msra.mxu0 0.0
    %1514 = vmatprep.subr.mxu0 0.0
    %1515 = vmatpush1.msra.mxu0 0.0
    %1516 = vmatprep.mubr.f32.mxu0 0.0
    %1517 = vmatmul.mubr.f32.gmra.mrb[0].mxu0 %v1174
    %v1518 = vpop.f32.mrb[0].mxu0
    %v1519 = vadd.f32 %v1155, %v1518
    %v1520 = vpop.f32.mrb[0].mxu0
    %v1521 = vadd.f32 %v1155, %v1520
    %1522 = vmatprep.mubr.f32.mxu0 0.0
    %1523 = vmatmul.mubr.f32.gmra.mrb[0].mxu0 %v1177
    %v1524 = vpop.f32.mrb[0].mxu0
    %v1525 = vadd.f32 %v1160, %v1524
    %v1526 = vpop.f32.mrb[0].mxu0
    %v1527 = vadd.f32 %v1160, %v1526
    %1528 = vmatprep.mubr.f32.mxu0 0.0
    %1529 = vmatmul.mubr.f32.gmra.mrb[0].mxu0 %v1180
    %v1530 = vpop.f32.mrb[0].mxu0
    %v1531 = vadd.f32 %v1165, %v1530
    %v1532 = vpop.f32.mrb[0].mxu0
    %v1533 = vadd.f32 %v1165, %v1532
    %1534 = vmatprep.mubr.f32.mxu0 0.0
    %1535 = vmatmul.mubr.f32.gmra.mrb[0].mxu0 %v1183
    %v1536 = vpop.f32.mrb[0].mxu0
    %v1537 = vadd.f32 %v1170, %v1536
    %v1538 = vpop.f32.mrb[0].mxu0
    %v1539 = vadd.f32 %v1170, %v1538
    %1540 = vdwg.mxu0
    %1541 = vmatprep.subr.mxu0 %v1113
    %1542 = vmatpush1.msra.mxu0 %v1112
    %1543 = vmatprep.subr.mxu0 %v1123
    %1544 = vmatpush1.msra.mxu0 %v1122
    %1545 = vmatprep.subr.mxu0 %v1133
    %1546 = vmatpush1.msra.mxu0 %v1132
    %1547 = vmatprep.subr.mxu0 %v1143
    %1548 = vmatpush1.msra.mxu0 %v1142
    %1549 = vmatprep.subr.mxu0 0.0
    %1550 = vmatpush1.msra.mxu0 0.0
    %1551 = vmatprep.subr.mxu0 0.0
    %1552 = vmatpush1.msra.mxu0 0.0
    %1553 = vmatprep.subr.mxu0 0.0
    %1554 = vmatpush1.msra.mxu0 0.0
    %1555 = vmatprep.subr.mxu0 0.0
    %1556 = vmatpush1.msra.mxu0 0.0
    %1557 = vmatprep.subr.mxu0 0.0
    %1558 = vmatpush1.msra.mxu0 0.0
    %1559 = vmatprep.subr.mxu0 0.0
    %1560 = vmatpush1.msra.mxu0 0.0
    %1561 = vmatprep.subr.mxu0 0.0
    %1562 = vmatpush1.msra.mxu0 0.0
    %1563 = vmatprep.subr.mxu0 0.0
    %1564 = vmatpush1.msra.mxu0 0.0
    %1565 = vmatprep.subr.mxu0 0.0
    %1566 = vmatpush1.msra.mxu0 0.0
    %1567 = vmatprep.subr.mxu0 0.0
    %1568 = vmatpush1.msra.mxu0 0.0
    %1569 = vmatprep.subr.mxu0 0.0
    %1570 = vmatpush1.msra.mxu0 0.0
    %1571 = vmatprep.subr.mxu0 0.0
    %1572 = vmatpush1.msra.mxu0 0.0
    %1573 = vmatprep.subr.mxu0 0.0
    %1574 = vmatpush1.msra.mxu0 0.0
    %1575 = vmatprep.subr.mxu0 0.0
    %1576 = vmatpush1.msra.mxu0 0.0
    %1577 = vmatprep.subr.mxu0 0.0
    %1578 = vmatpush1.msra.mxu0 0.0
    %1579 = vmatprep.subr.mxu0 0.0
    %1580 = vmatpush1.msra.mxu0 0.0
    %1581 = vmatprep.subr.mxu0 0.0
    %1582 = vmatpush1.msra.mxu0 0.0
    %1583 = vmatprep.subr.mxu0 0.0
    %1584 = vmatpush1.msra.mxu0 0.0
    %1585 = vmatprep.subr.mxu0 0.0
    %1586 = vmatpush1.msra.mxu0 0.0
    %1587 = vmatprep.subr.mxu0 0.0
    %1588 = vmatpush1.msra.mxu0 0.0
    %1589 = vmatprep.subr.mxu0 0.0
    %1590 = vmatpush1.msra.mxu0 0.0
    %1591 = vmatprep.subr.mxu0 0.0
    %1592 = vmatpush1.msra.mxu0 0.0
    %1593 = vmatprep.subr.mxu0 0.0
    %1594 = vmatpush1.msra.mxu0 0.0
    %1595 = vmatprep.subr.mxu0 0.0
    %1596 = vmatpush1.msra.mxu0 0.0
    %1597 = vmatprep.subr.mxu0 0.0
    %1598 = vmatpush1.msra.mxu0 0.0
    %1599 = vmatprep.subr.mxu0 0.0
    %1600 = vmatpush1.msra.mxu0 0.0
    %1601 = vmatprep.subr.mxu0 0.0
    %1602 = vmatpush1.msra.mxu0 0.0
    %1603 = vmatprep.subr.mxu0 0.0
    %1604 = vmatpush1.msra.mxu0 0.0
    %1605 = vmatprep.mubr.f32.mxu0 0.0
    %1606 = vmatmul.mubr.f32.gmra.mrb[0].mxu0 %v1174
    %v1607 = vpop.f32.mrb[0].mxu0
    %v1608 = vadd.f32 %v1155, %v1607
    %v1609 = vpop.f32.mrb[0].mxu0
    %v1610 = vadd.f32 %v1155, %v1609
    %1611 = vmatprep.mubr.f32.mxu0 0.0
    %1612 = vmatmul.mubr.f32.gmra.mrb[0].mxu0 %v1177
    %v1613 = vpop.f32.mrb[0].mxu0
    %v1614 = vadd.f32 %v1160, %v1613
    %v1615 = vpop.f32.mrb[0].mxu0
    %v1616 = vadd.f32 %v1160, %v1615
    %1617 = vmatprep.mubr.f32.mxu0 0.0
    %1618 = vmatmul.mubr.f32.gmra.mrb[0].mxu0 %v1180
    %v1619 = vpop.f32.mrb[0].mxu0
    %v1620 = vadd.f32 %v1165, %v1619
    %v1621 = vpop.f32.mrb[0].mxu0
    %v1622 = vadd.f32 %v1165, %v1621
    %1623 = vmatprep.mubr.f32.mxu0 0.0
    %1624 = vmatmul.mubr.f32.gmra.mrb[0].mxu0 %v1183
    %v1625 = vpop.f32.mrb[0].mxu0
    %v1626 = vadd.f32 %v1170, %v1625
    %v1627 = vpop.f32.mrb[0].mxu0
    %v1628 = vadd.f32 %v1170, %v1627
    %1629 = vdwg.mxu0
    %v1630 = vmax.f32 %v1252, 0.0
    %v1631 = vmax.f32 %v1254, 0.0
    %v1632 = vmax.f32 %v1341, 0.0
    %v1633 = vmax.f32 %v1343, 0.0
    %v1634 = vmax.f32 %v1430, 0.0
    %v1635 = vmax.f32 %v1432, 0.0
    %v1636 = vmax.f32 %v1519, 0.0
    %v1637 = vmax.f32 %v1521, 0.0
    %v1638 = vmax.f32 %v1608, 0.0
    %v1639 = vmax.f32 %v1610, 0.0
    %v1640 = vmax.f32 %v1258, 0.0
    %v1641 = vmax.f32 %v1260, 0.0
    %v1642 = vmax.f32 %v1347, 0.0
    %v1643 = vmax.f32 %v1349, 0.0
    %v1644 = vmax.f32 %v1436, 0.0
    %v1645 = vmax.f32 %v1438, 0.0
    %v1646 = vmax.f32 %v1525, 0.0
    %v1647 = vmax.f32 %v1527, 0.0
    %v1648 = vmax.f32 %v1614, 0.0
    %v1649 = vmax.f32 %v1616, 0.0
    %v1650 = vmax.f32 %v1264, 0.0
    %v1651 = vmax.f32 %v1266, 0.0
    %v1652 = vmax.f32 %v1353, 0.0
    %v1653 = vmax.f32 %v1355, 0.0
    %v1654 = vmax.f32 %v1442, 0.0
    %v1655 = vmax.f32 %v1444, 0.0
    %v1656 = vmax.f32 %v1531, 0.0
    %v1657 = vmax.f32 %v1533, 0.0
    %v1658 = vmax.f32 %v1620, 0.0
    %v1659 = vmax.f32 %v1622, 0.0
    %v1660 = vmax.f32 %v1270, 0.0
    %v1661 = vmax.f32 %v1272, 0.0
    %v1662 = vmax.f32 %v1359, 0.0
    %v1663 = vmax.f32 %v1361, 0.0
    %v1664 = vmax.f32 %v1448, 0.0
    %v1665 = vmax.f32 %v1450, 0.0
    %v1666 = vmax.f32 %v1537, 0.0
    %v1667 = vmax.f32 %v1539, 0.0
    %v1668 = vmax.f32 %v1626, 0.0
    %v1669 = vmax.f32 %v1628, 0.0
    %v1670 = vld [vmem:[%s2 + $0x20] sm:$0xff]
    %v1671 = vld [vmem:[%s2 + $0x28] sm:$0xff]
    %v1672 = vld [vmem:[%s2 + $0x30] sm:$0xff]
    %v1673 = vld [vmem:[%s2 + $0x38] sm:$0xff]
    %v1674 = vld [vmem:[%s3 + $0x40] sm:$0xff]
    %v1675 = vld [vmem:[%s3 + $0x48] sm:$0xff]
    %v1676 = vld [vmem:[%s3 + $0x50] sm:$0xff]
    %v1677 = vld [vmem:[%s3 + $0x58] sm:$0xff]
    %1679 = vset.pattern.permute.xlu0 0
    %1680 = vperm.xlu0 %1679, %v1674
    %v1681 = vpop.permute.xlu0 %1680
    %1684 = vset.pattern.permute.xlu0 0
    %1685 = vperm.xlu0 %1684, %v1675
    %v1686 = vpop.permute.xlu0 %1685
    %1689 = vset.pattern.permute.xlu0 0
    %1690 = vperm.xlu0 %1689, %v1676
    %v1691 = vpop.permute.xlu0 %1690
    %1694 = vset.pattern.permute.xlu0 0
    %1695 = vperm.xlu0 %1694, %v1677
    %v1696 = vpop.permute.xlu0 %1695
    %v1699 = vsel %vm1172, %v1670, 0
    %v1702 = vsel %vm1172, %v1671, 0
    %v1705 = vsel %vm1172, %v1672, 0
    %v1708 = vsel %vm1172, %v1673, 0
    %1710 = vmatprep.subr.mxu0 %v1631
    %1711 = vmatpush1.msra.mxu0 %v1630
    %1712 = vmatprep.subr.mxu0 %v1641
    %1713 = vmatpush1.msra.mxu0 %v1640
    %1714 = vmatprep.subr.mxu0 %v1651
    %1715 = vmatpush1.msra.mxu0 %v1650
    %1716 = vmatprep.subr.mxu0 %v1661
    %1717 = vmatpush1.msra.mxu0 %v1660
    %1718 = vmatprep.subr.mxu0 0.0
    %1719 = vmatpush1.msra.mxu0 0.0
    %1720 = vmatprep.subr.mxu0 0.0
    %1721 = vmatpush1.msra.mxu0 0.0
    %1722 = vmatprep.subr.mxu0 0.0
    %1723 = vmatpush1.msra.mxu0 0.0
    %1724 = vmatprep.subr.mxu0 0.0
    %1725 = vmatpush1.msra.mxu0 0.0
    %1726 = vmatprep.subr.mxu0 0.0
    %1727 = vmatpush1.msra.mxu0 0.0
    %1728 = vmatprep.subr.mxu0 0.0
    %1729 = vmatpush1.msra.mxu0 0.0
    %1730 = vmatprep.subr.mxu0 0.0
    %1731 = vmatpush1.msra.mxu0 0.0
    %1732 = vmatprep.subr.mxu0 0.0
    %1733 = vmatpush1.msra.mxu0 0.0
    %1734 = vmatprep.subr.mxu0 0.0
    %1735 = vmatpush1.msra.mxu0 0.0
    %1736 = vmatprep.subr.mxu0 0.0
    %1737 = vmatpush1.msra.mxu0 0.0
    %1738 = vmatprep.subr.mxu0 0.0
    %1739 = vmatpush1.msra.mxu0 0.0
    %1740 = vmatprep.subr.mxu0 0.0
    %1741 = vmatpush1.msra.mxu0 0.0
    %1742 = vmatprep.subr.mxu0 0.0
    %1743 = vmatpush1.msra.mxu0 0.0
    %1744 = vmatprep.subr.mxu0 0.0
    %1745 = vmatpush1.msra.mxu0 0.0
    %1746 = vmatprep.subr.mxu0 0.0
    %1747 = vmatpush1.msra.mxu0 0.0
    %1748 = vmatprep.subr.mxu0 0.0
    %1749 = vmatpush1.msra.mxu0 0.0
    %1750 = vmatprep.subr.mxu0 0.0
    %1751 = vmatpush1.msra.mxu0 0.0
    %1752 = vmatprep.subr.mxu0 0.0
    %1753 = vmatpush1.msra.mxu0 0.0
    %1754 = vmatprep.subr.mxu0 0.0
    %1755 = vmatpush1.msra.mxu0 0.0
    %1756 = vmatprep.subr.mxu0 0.0
    %1757 = vmatpush1.msra.mxu0 0.0
    %1758 = vmatprep.subr.mxu0 0.0
    %1759 = vmatpush1.msra.mxu0 0.0
    %1760 = vmatprep.subr.mxu0 0.0
    %1761 = vmatpush1.msra.mxu0 0.0
    %1762 = vmatprep.subr.mxu0 0.0
    %1763 = vmatpush1.msra.mxu0 0.0
    %1764 = vmatprep.subr.mxu0 0.0
    %1765 = vmatpush1.msra.mxu0 0.0
    %1766 = vmatprep.subr.mxu0 0.0
    %1767 = vmatpush1.msra.mxu0 0.0
    %1768 = vmatprep.subr.mxu0 0.0
    %1769 = vmatpush1.msra.mxu0 0.0
    %1770 = vmatprep.subr.mxu0 0.0
    %1771 = vmatpush1.msra.mxu0 0.0
    %1772 = vmatprep.subr.mxu0 0.0
    %1773 = vmatpush1.msra.mxu0 0.0
    %1774 = vmatprep.mubr.f32.mxu0 0.0
    %1775 = vmatmul.mubr.f32.gmra.mrb[0].mxu0 %v1699
    %v1776 = vpop.f32.mrb[0].mxu0
    %v1777 = vadd.f32 %v1681, %v1776
    %v1778 = vpop.f32.mrb[0].mxu0
    %v1779 = vadd.f32 %v1681, %v1778
    %1780 = vmatprep.mubr.f32.mxu0 0.0
    %1781 = vmatmul.mubr.f32.gmra.mrb[0].mxu0 %v1702
    %v1782 = vpop.f32.mrb[0].mxu0
    %v1783 = vadd.f32 %v1686, %v1782
    %v1784 = vpop.f32.mrb[0].mxu0
    %v1785 = vadd.f32 %v1686, %v1784
    %1786 = vmatprep.mubr.f32.mxu0 0.0
    %1787 = vmatmul.mubr.f32.gmra.mrb[0].mxu0 %v1705
    %v1788 = vpop.f32.mrb[0].mxu0
    %v1789 = vadd.f32 %v1691, %v1788
    %v1790 = vpop.f32.mrb[0].mxu0
    %v1791 = vadd.f32 %v1691, %v1790
    %1792 = vmatprep.mubr.f32.mxu0 0.0
    %1793 = vmatmul.mubr.f32.gmra.mrb[0].mxu0 %v1708
    %v1794 = vpop.f32.mrb[0].mxu0
    %v1795 = vadd.f32 %v1696, %v1794
    %v1796 = vpop.f32.mrb[0].mxu0
    %v1797 = vadd.f32 %v1696, %v1796
    %1798 = vdwg.mxu0
    %1799 = vmatprep.subr.mxu0 %v1633
    %1800 = vmatpush1.msra.mxu0 %v1632
    %1801 = vmatprep.subr.mxu0 %v1643
    %1802 = vmatpush1.msra.mxu0 %v1642
    %1803 = vmatprep.subr.mxu0 %v1653
    %1804 = vmatpush1.msra.mxu0 %v1652
    %1805 = vmatprep.subr.mxu0 %v1663
    %1806 = vmatpush1.msra.mxu0 %v1662
    %1807 = vmatprep.subr.mxu0 0.0
    %1808 = vmatpush1.msra.mxu0 0.0
    %1809 = vmatprep.subr.mxu0 0.0
    %1810 = vmatpush1.msra.mxu0 0.0
    %1811 = vmatprep.subr.mxu0 0.0
    %1812 = vmatpush1.msra.mxu0 0.0
    %1813 = vmatprep.subr.mxu0 0.0
    %1814 = vmatpush1.msra.mxu0 0.0
    %1815 = vmatprep.subr.mxu0 0.0
    %1816 = vmatpush1.msra.mxu0 0.0
    %1817 = vmatprep.subr.mxu0 0.0
    %1818 = vmatpush1.msra.mxu0 0.0
    %1819 = vmatprep.subr.mxu0 0.0
    %1820 = vmatpush1.msra.mxu0 0.0
    %1821 = vmatprep.subr.mxu0 0.0
    %1822 = vmatpush1.msra.mxu0 0.0
    %1823 = vmatprep.subr.mxu0 0.0
    %1824 = vmatpush1.msra.mxu0 0.0
    %1825 = vmatprep.subr.mxu0 0.0
    %1826 = vmatpush1.msra.mxu0 0.0
    %1827 = vmatprep.subr.mxu0 0.0
    %1828 = vmatpush1.msra.mxu0 0.0
    %1829 = vmatprep.subr.mxu0 0.0
    %1830 = vmatpush1.msra.mxu0 0.0
    %1831 = vmatprep.subr.mxu0 0.0
    %1832 = vmatpush1.msra.mxu0 0.0
    %1833 = vmatprep.subr.mxu0 0.0
    %1834 = vmatpush1.msra.mxu0 0.0
    %1835 = vmatprep.subr.mxu0 0.0
    %1836 = vmatpush1.msra.mxu0 0.0
    %1837 = vmatprep.subr.mxu0 0.0
    %1838 = vmatpush1.msra.mxu0 0.0
    %1839 = vmatprep.subr.mxu0 0.0
    %1840 = vmatpush1.msra.mxu0 0.0
    %1841 = vmatprep.subr.mxu0 0.0
    %1842 = vmatpush1.msra.mxu0 0.0
    %1843 = vmatprep.subr.mxu0 0.0
    %1844 = vmatpush1.msra.mxu0 0.0
    %1845 = vmatprep.subr.mxu0 0.0
    %1846 = vmatpush1.msra.mxu0 0.0
    %1847 = vmatprep.subr.mxu0 0.0
    %1848 = vmatpush1.msra.mxu0 0.0
    %1849 = vmatprep.subr.mxu0 0.0
    %1850 = vmatpush1.msra.mxu0 0.0
    %1851 = vmatprep.subr.mxu0 0.0
    %1852 = vmatpush1.msra.mxu0 0.0
    %1853 = vmatprep.subr.mxu0 0.0
    %1854 = vmatpush1.msra.mxu0 0.0
    %1855 = vmatprep.subr.mxu0 0.0
    %1856 = vmatpush1.msra.mxu0 0.0
    %1857 = vmatprep.subr.mxu0 0.0
    %1858 = vmatpush1.msra.mxu0 0.0
    %1859 = vmatprep.subr.mxu0 0.0
    %1860 = vmatpush1.msra.mxu0 0.0
    %1861 = vmatprep.subr.mxu0 0.0
    %1862 = vmatpush1.msra.mxu0 0.0
    %1863 = vmatprep.mubr.f32.mxu0 0.0
    %1864 = vmatmul.mubr.f32.gmra.mrb[0].mxu0 %v1699
    %v1865 = vpop.f32.mrb[0].mxu0
    %v1866 = vadd.f32 %v1681, %v1865
    %v1867 = vpop.f32.mrb[0].mxu0
    %v1868 = vadd.f32 %v1681, %v1867
    %1869 = vmatprep.mubr.f32.mxu0 0.0
    %1870 = vmatmul.mubr.f32.gmra.mrb[0].mxu0 %v1702
    %v1871 = vpop.f32.mrb[0].mxu0
    %v1872 = vadd.f32 %v1686, %v1871
    %v1873 = vpop.f32.mrb[0].mxu0
    %v1874 = vadd.f32 %v1686, %v1873
    %1875 = vmatprep.mubr.f32.mxu0 0.0
    %1876 = vmatmul.mubr.f32.gmra.mrb[0].mxu0 %v1705
    %v1877 = vpop.f32.mrb[0].mxu0
    %v1878 = vadd.f32 %v1691, %v1877
    %v1879 = vpop.f32.mrb[0].mxu0
    %v1880 = vadd.f32 %v1691, %v1879
    %1881 = vmatprep.mubr.f32.mxu0 0.0
    %1882 = vmatmul.mubr.f32.gmra.mrb[0].mxu0 %v1708
    %v1883 = vpop.f32.mrb[0].mxu0
    %v1884 = vadd.f32 %v1696, %v1883
    %v1885 = vpop.f32.mrb[0].mxu0
    %v1886 = vadd.f32 %v1696, %v1885
    %1887 = vdwg.mxu0
    %1888 = vmatprep.subr.mxu0 %v1635
    %1889 = vmatpush1.msra.mxu0 %v1634
    %1890 = vmatprep.subr.mxu0 %v1645
    %1891 = vmatpush1.msra.mxu0 %v1644
    %1892 = vmatprep.subr.mxu0 %v1655
    %1893 = vmatpush1.msra.mxu0 %v1654
    %1894 = vmatprep.subr.mxu0 %v1665
    %1895 = vmatpush1.msra.mxu0 %v1664
    %1896 = vmatprep.subr.mxu0 0.0
    %1897 = vmatpush1.msra.mxu0 0.0
    %1898 = vmatprep.subr.mxu0 0.0
    %1899 = vmatpush1.msra.mxu0 0.0
    %1900 = vmatprep.subr.mxu0 0.0
    %1901 = vmatpush1.msra.mxu0 0.0
    %1902 = vmatprep.subr.mxu0 0.0
    %1903 = vmatpush1.msra.mxu0 0.0
    %1904 = vmatprep.subr.mxu0 0.0
    %1905 = vmatpush1.msra.mxu0 0.0
    %1906 = vmatprep.subr.mxu0 0.0
    %1907 = vmatpush1.msra.mxu0 0.0
    %1908 = vmatprep.subr.mxu0 0.0
    %1909 = vmatpush1.msra.mxu0 0.0
    %1910 = vmatprep.subr.mxu0 0.0
    %1911 = vmatpush1.msra.mxu0 0.0
    %1912 = vmatprep.subr.mxu0 0.0
    %1913 = vmatpush1.msra.mxu0 0.0
    %1914 = vmatprep.subr.mxu0 0.0
    %1915 = vmatpush1.msra.mxu0 0.0
    %1916 = vmatprep.subr.mxu0 0.0
    %1917 = vmatpush1.msra.mxu0 0.0
    %1918 = vmatprep.subr.mxu0 0.0
    %1919 = vmatpush1.msra.mxu0 0.0
    %1920 = vmatprep.subr.mxu0 0.0
    %1921 = vmatpush1.msra.mxu0 0.0
    %1922 = vmatprep.subr.mxu0 0.0
    %1923 = vmatpush1.msra.mxu0 0.0
    %1924 = vmatprep.subr.mxu0 0.0
    %1925 = vmatpush1.msra.mxu0 0.0
    %1926 = vmatprep.subr.mxu0 0.0
    %1927 = vmatpush1.msra.mxu0 0.0
    %1928 = vmatprep.subr.mxu0 0.0
    %1929 = vmatpush1.msra.mxu0 0.0
    %1930 = vmatprep.subr.mxu0 0.0
    %1931 = vmatpush1.msra.mxu0 0.0
    %1932 = vmatprep.subr.mxu0 0.0
    %1933 = vmatpush1.msra.mxu0 0.0
    %1934 = vmatprep.subr.mxu0 0.0
    %1935 = vmatpush1.msra.mxu0 0.0
    %1936 = vmatprep.subr.mxu0 0.0
    %1937 = vmatpush1.msra.mxu0 0.0
    %1938 = vmatprep.subr.mxu0 0.0
    %1939 = vmatpush1.msra.mxu0 0.0
    %1940 = vmatprep.subr.mxu0 0.0
    %1941 = vmatpush1.msra.mxu0 0.0
    %1942 = vmatprep.subr.mxu0 0.0
    %1943 = vmatpush1.msra.mxu0 0.0
    %1944 = vmatprep.subr.mxu0 0.0
    %1945 = vmatpush1.msra.mxu0 0.0
    %1946 = vmatprep.subr.mxu0 0.0
    %1947 = vmatpush1.msra.mxu0 0.0
    %1948 = vmatprep.subr.mxu0 0.0
    %1949 = vmatpush1.msra.mxu0 0.0
    %1950 = vmatprep.subr.mxu0 0.0
    %1951 = vmatpush1.msra.mxu0 0.0
    %1952 = vmatprep.mubr.f32.mxu0 0.0
    %1953 = vmatmul.mubr.f32.gmra.mrb[0].mxu0 %v1699
    %v1954 = vpop.f32.mrb[0].mxu0
    %v1955 = vadd.f32 %v1681, %v1954
    %v1956 = vpop.f32.mrb[0].mxu0
    %v1957 = vadd.f32 %v1681, %v1956
    %1958 = vmatprep.mubr.f32.mxu0 0.0
    %1959 = vmatmul.mubr.f32.gmra.mrb[0].mxu0 %v1702
    %v1960 = vpop.f32.mrb[0].mxu0
    %v1961 = vadd.f32 %v1686, %v1960
    %v1962 = vpop.f32.mrb[0].mxu0
    %v1963 = vadd.f32 %v1686, %v1962
    %1964 = vmatprep.mubr.f32.mxu0 0.0
    %1965 = vmatmul.mubr.f32.gmra.mrb[0].mxu0 %v1705
    %v1966 = vpop.f32.mrb[0].mxu0
    %v1967 = vadd.f32 %v1691, %v1966
    %v1968 = vpop.f32.mrb[0].mxu0
    %v1969 = vadd.f32 %v1691, %v1968
    %1970 = vmatprep.mubr.f32.mxu0 0.0
    %1971 = vmatmul.mubr.f32.gmra.mrb[0].mxu0 %v1708
    %v1972 = vpop.f32.mrb[0].mxu0
    %v1973 = vadd.f32 %v1696, %v1972
    %v1974 = vpop.f32.mrb[0].mxu0
    %v1975 = vadd.f32 %v1696, %v1974
    %1976 = vdwg.mxu0
    %1977 = vmatprep.subr.mxu0 %v1637
    %1978 = vmatpush1.msra.mxu0 %v1636
    %1979 = vmatprep.subr.mxu0 %v1647
    %1980 = vmatpush1.msra.mxu0 %v1646
    %1981 = vmatprep.subr.mxu0 %v1657
    %1982 = vmatpush1.msra.mxu0 %v1656
    %1983 = vmatprep.subr.mxu0 %v1667
    %1984 = vmatpush1.msra.mxu0 %v1666
    %1985 = vmatprep.subr.mxu0 0.0
    %1986 = vmatpush1.msra.mxu0 0.0
    %1987 = vmatprep.subr.mxu0 0.0
    %1988 = vmatpush1.msra.mxu0 0.0
    %1989 = vmatprep.subr.mxu0 0.0
    %1990 = vmatpush1.msra.mxu0 0.0
    %1991 = vmatprep.subr.mxu0 0.0
    %1992 = vmatpush1.msra.mxu0 0.0
    %1993 = vmatprep.subr.mxu0 0.0
    %1994 = vmatpush1.msra.mxu0 0.0
    %1995 = vmatprep.subr.mxu0 0.0
    %1996 = vmatpush1.msra.mxu0 0.0
    %1997 = vmatprep.subr.mxu0 0.0
    %1998 = vmatpush1.msra.mxu0 0.0
    %1999 = vmatprep.subr.mxu0 0.0
    %2000 = vmatpush1.msra.mxu0 0.0
    %2001 = vmatprep.subr.mxu0 0.0
    %2002 = vmatpush1.msra.mxu0 0.0
    %2003 = vmatprep.subr.mxu0 0.0
    %2004 = vmatpush1.msra.mxu0 0.0
    %2005 = vmatprep.subr.mxu0 0.0
    %2006 = vmatpush1.msra.mxu0 0.0
    %2007 = vmatprep.subr.mxu0 0.0
    %2008 = vmatpush1.msra.mxu0 0.0
    %2009 = vmatprep.subr.mxu0 0.0
    %2010 = vmatpush1.msra.mxu0 0.0
    %2011 = vmatprep.subr.mxu0 0.0
    %2012 = vmatpush1.msra.mxu0 0.0
    %2013 = vmatprep.subr.mxu0 0.0
    %2014 = vmatpush1.msra.mxu0 0.0
    %2015 = vmatprep.subr.mxu0 0.0
    %2016 = vmatpush1.msra.mxu0 0.0
    %2017 = vmatprep.subr.mxu0 0.0
    %2018 = vmatpush1.msra.mxu0 0.0
    %2019 = vmatprep.subr.mxu0 0.0
    %2020 = vmatpush1.msra.mxu0 0.0
    %2021 = vmatprep.subr.mxu0 0.0
    %2022 = vmatpush1.msra.mxu0 0.0
    %2023 = vmatprep.subr.mxu0 0.0
    %2024 = vmatpush1.msra.mxu0 0.0
    %2025 = vmatprep.subr.mxu0 0.0
    %2026 = vmatpush1.msra.mxu0 0.0
    %2027 = vmatprep.subr.mxu0 0.0
    %2028 = vmatpush1.msra.mxu0 0.0
    %2029 = vmatprep.subr.mxu0 0.0
    %2030 = vmatpush1.msra.mxu0 0.0
    %2031 = vmatprep.subr.mxu0 0.0
    %2032 = vmatpush1.msra.mxu0 0.0
    %2033 = vmatprep.subr.mxu0 0.0
    %2034 = vmatpush1.msra.mxu0 0.0
    %2035 = vmatprep.subr.mxu0 0.0
    %2036 = vmatpush1.msra.mxu0 0.0
    %2037 = vmatprep.subr.mxu0 0.0
    %2038 = vmatpush1.msra.mxu0 0.0
    %2039 = vmatprep.subr.mxu0 0.0
    %2040 = vmatpush1.msra.mxu0 0.0
    %2041 = vmatprep.mubr.f32.mxu0 0.0
    %2042 = vmatmul.mubr.f32.gmra.mrb[0].mxu0 %v1699
    %v2043 = vpop.f32.mrb[0].mxu0
    %v2044 = vadd.f32 %v1681, %v2043
    %v2045 = vpop.f32.mrb[0].mxu0
    %v2046 = vadd.f32 %v1681, %v2045
    %2047 = vmatprep.mubr.f32.mxu0 0.0
    %2048 = vmatmul.mubr.f32.gmra.mrb[0].mxu0 %v1702
    %v2049 = vpop.f32.mrb[0].mxu0
    %v2050 = vadd.f32 %v1686, %v2049
    %v2051 = vpop.f32.mrb[0].mxu0
    %v2052 = vadd.f32 %v1686, %v2051
    %2053 = vmatprep.mubr.f32.mxu0 0.0
    %2054 = vmatmul.mubr.f32.gmra.mrb[0].mxu0 %v1705
    %v2055 = vpop.f32.mrb[0].mxu0
    %v2056 = vadd.f32 %v1691, %v2055
    %v2057 = vpop.f32.mrb[0].mxu0
    %v2058 = vadd.f32 %v1691, %v2057
    %2059 = vmatprep.mubr.f32.mxu0 0.0
    %2060 = vmatmul.mubr.f32.gmra.mrb[0].mxu0 %v1708
    %v2061 = vpop.f32.mrb[0].mxu0
    %v2062 = vadd.f32 %v1696, %v2061
    %v2063 = vpop.f32.mrb[0].mxu0
    %v2064 = vadd.f32 %v1696, %v2063
    %2065 = vdwg.mxu0
    %2066 = vmatprep.subr.mxu0 %v1639
    %2067 = vmatpush1.msra.mxu0 %v1638
    %2068 = vmatprep.subr.mxu0 %v1649
    %2069 = vmatpush1.msra.mxu0 %v1648
    %2070 = vmatprep.subr.mxu0 %v1659
    %2071 = vmatpush1.msra.mxu0 %v1658
    %2072 = vmatprep.subr.mxu0 %v1669
    %2073 = vmatpush1.msra.mxu0 %v1668
    %2074 = vmatprep.subr.mxu0 0.0
    %2075 = vmatpush1.msra.mxu0 0.0
    %2076 = vmatprep.subr.mxu0 0.0
    %2077 = vmatpush1.msra.mxu0 0.0
    %2078 = vmatprep.subr.mxu0 0.0
    %2079 = vmatpush1.msra.mxu0 0.0
    %2080 = vmatprep.subr.mxu0 0.0
    %2081 = vmatpush1.msra.mxu0 0.0
    %2082 = vmatprep.subr.mxu0 0.0
    %2083 = vmatpush1.msra.mxu0 0.0
    %2084 = vmatprep.subr.mxu0 0.0
    %2085 = vmatpush1.msra.mxu0 0.0
    %2086 = vmatprep.subr.mxu0 0.0
    %2087 = vmatpush1.msra.mxu0 0.0
    %2088 = vmatprep.subr.mxu0 0.0
    %2089 = vmatpush1.msra.mxu0 0.0
    %2090 = vmatprep.subr.mxu0 0.0
    %2091 = vmatpush1.msra.mxu0 0.0
    %2092 = vmatprep.subr.mxu0 0.0
    %2093 = vmatpush1.msra.mxu0 0.0
    %2094 = vmatprep.subr.mxu0 0.0
    %2095 = vmatpush1.msra.mxu0 0.0
    %2096 = vmatprep.subr.mxu0 0.0
    %2097 = vmatpush1.msra.mxu0 0.0
    %2098 = vmatprep.subr.mxu0 0.0
    %2099 = vmatpush1.msra.mxu0 0.0
    %2100 = vmatprep.subr.mxu0 0.0
    %2101 = vmatpush1.msra.mxu0 0.0
    %2102 = vmatprep.subr.mxu0 0.0
    %2103 = vmatpush1.msra.mxu0 0.0
    %2104 = vmatprep.subr.mxu0 0.0
    %2105 = vmatpush1.msra.mxu0 0.0
    %2106 = vmatprep.subr.mxu0 0.0
    %2107 = vmatpush1.msra.mxu0 0.0
    %2108 = vmatprep.subr.mxu0 0.0
    %2109 = vmatpush1.msra.mxu0 0.0
    %2110 = vmatprep.subr.mxu0 0.0
    %2111 = vmatpush1.msra.mxu0 0.0
    %2112 = vmatprep.subr.mxu0 0.0
    %2113 = vmatpush1.msra.mxu0 0.0
    %2114 = vmatprep.subr.mxu0 0.0
    %2115 = vmatpush1.msra.mxu0 0.0
    %2116 = vmatprep.subr.mxu0 0.0
    %2117 = vmatpush1.msra.mxu0 0.0
    %2118 = vmatprep.subr.mxu0 0.0
    %2119 = vmatpush1.msra.mxu0 0.0
    %2120 = vmatprep.subr.mxu0 0.0
    %2121 = vmatpush1.msra.mxu0 0.0
    %2122 = vmatprep.subr.mxu0 0.0
    %2123 = vmatpush1.msra.mxu0 0.0
    %2124 = vmatprep.subr.mxu0 0.0
    %2125 = vmatpush1.msra.mxu0 0.0
    %2126 = vmatprep.subr.mxu0 0.0
    %2127 = vmatpush1.msra.mxu0 0.0
    %2128 = vmatprep.subr.mxu0 0.0
    %2129 = vmatpush1.msra.mxu0 0.0
    %2130 = vmatprep.mubr.f32.mxu0 0.0
    %2131 = vmatmul.mubr.f32.gmra.mrb[0].mxu0 %v1699
    %v2132 = vpop.f32.mrb[0].mxu0
    %v2133 = vadd.f32 %v1681, %v2132
    %v2134 = vpop.f32.mrb[0].mxu0
    %v2135 = vadd.f32 %v1681, %v2134
    %2136 = vmatprep.mubr.f32.mxu0 0.0
    %2137 = vmatmul.mubr.f32.gmra.mrb[0].mxu0 %v1702
    %v2138 = vpop.f32.mrb[0].mxu0
    %v2139 = vadd.f32 %v1686, %v2138
    %v2140 = vpop.f32.mrb[0].mxu0
    %v2141 = vadd.f32 %v1686, %v2140
    %2142 = vmatprep.mubr.f32.mxu0 0.0
    %2143 = vmatmul.mubr.f32.gmra.mrb[0].mxu0 %v1705
    %v2144 = vpop.f32.mrb[0].mxu0
    %v2145 = vadd.f32 %v1691, %v2144
    %v2146 = vpop.f32.mrb[0].mxu0
    %v2147 = vadd.f32 %v1691, %v2146
    %2148 = vmatprep.mubr.f32.mxu0 0.0
    %2149 = vmatmul.mubr.f32.gmra.mrb[0].mxu0 %v1708
    %v2150 = vpop.f32.mrb[0].mxu0
    %v2151 = vadd.f32 %v1696, %v2150
    %v2152 = vpop.f32.mrb[0].mxu0
    %v2153 = vadd.f32 %v1696, %v2152
    %2154 = vdwg.mxu0
    %v2155 = vmax.f32 %v1777, 0.0
    %v2156 = vmax.f32 %v1779, 0.0
    %v2157 = vmax.f32 %v1866, 0.0
    %v2158 = vmax.f32 %v1868, 0.0
    %v2159 = vmax.f32 %v1955, 0.0
    %v2160 = vmax.f32 %v1957, 0.0
    %v2161 = vmax.f32 %v2044, 0.0
    %v2162 = vmax.f32 %v2046, 0.0
    %v2163 = vmax.f32 %v2133, 0.0
    %v2164 = vmax.f32 %v2135, 0.0
    %v2165 = vmax.f32 %v1783, 0.0
    %v2166 = vmax.f32 %v1785, 0.0
    %v2167 = vmax.f32 %v1872, 0.0
    %v2168 = vmax.f32 %v1874, 0.0
    %v2169 = vmax.f32 %v1961, 0.0
    %v2170 = vmax.f32 %v1963, 0.0
    %v2171 = vmax.f32 %v2050, 0.0
    %v2172 = vmax.f32 %v2052, 0.0
    %v2173 = vmax.f32 %v2139, 0.0
    %v2174 = vmax.f32 %v2141, 0.0
    %v2175 = vmax.f32 %v1789, 0.0
    %v2176 = vmax.f32 %v1791, 0.0
    %v2177 = vmax.f32 %v1878, 0.0
    %v2178 = vmax.f32 %v1880, 0.0
    %v2179 = vmax.f32 %v1967, 0.0
    %v2180 = vmax.f32 %v1969, 0.0
    %v2181 = vmax.f32 %v2056, 0.0
    %v2182 = vmax.f32 %v2058, 0.0
    %v2183 = vmax.f32 %v2145, 0.0
    %v2184 = vmax.f32 %v2147, 0.0
    %v2185 = vmax.f32 %v1795, 0.0
    %v2186 = vmax.f32 %v1797, 0.0
    %v2187 = vmax.f32 %v1884, 0.0
    %v2188 = vmax.f32 %v1886, 0.0
    %v2189 = vmax.f32 %v1973, 0.0
    %v2190 = vmax.f32 %v1975, 0.0
    %v2191 = vmax.f32 %v2062, 0.0
    %v2192 = vmax.f32 %v2064, 0.0
    %v2193 = vmax.f32 %v2151, 0.0
    %v2194 = vmax.f32 %v2153, 0.0
    %v2195 = vld [vmem:[%s2 + $0x40] sm:$0xff]
    %v2196 = vld [vmem:[%s2 + $0x48] sm:$0xff]
    %v2197 = vld [vmem:[%s2 + $0x50] sm:$0xff]
    %v2198 = vld [vmem:[%s2 + $0x58] sm:$0xff]
    %v2199 = vld [vmem:[%s3 + $0x60] sm:$0xff]
    %v2200 = vld [vmem:[%s3 + $0x68] sm:$0xff]
    %v2201 = vld [vmem:[%s3 + $0x70] sm:$0xff]
    %v2202 = vld [vmem:[%s3 + $0x78] sm:$0xff]
    %2204 = vset.pattern.permute.xlu0 0
    %2205 = vperm.xlu0 %2204, %v2199
    %v2206 = vpop.permute.xlu0 %2205
    %2209 = vset.pattern.permute.xlu0 0
    %2210 = vperm.xlu0 %2209, %v2200
    %v2211 = vpop.permute.xlu0 %2210
    %2214 = vset.pattern.permute.xlu0 0
    %2215 = vperm.xlu0 %2214, %v2201
    %v2216 = vpop.permute.xlu0 %2215
    %2219 = vset.pattern.permute.xlu0 0
    %2220 = vperm.xlu0 %2219, %v2202
    %v2221 = vpop.permute.xlu0 %2220
    %v2224 = vsel %vm1172, %v2195, 0
    %v2227 = vsel %vm1172, %v2196, 0
    %v2230 = vsel %vm1172, %v2197, 0
    %v2233 = vsel %vm1172, %v2198, 0
    %2235 = vmatprep.subr.mxu0 %v2156
    %2236 = vmatpush1.msra.mxu0 %v2155
    %2237 = vmatprep.subr.mxu0 %v2166
    %2238 = vmatpush1.msra.mxu0 %v2165
    %2239 = vmatprep.subr.mxu0 %v2176
    %2240 = vmatpush1.msra.mxu0 %v2175
    %2241 = vmatprep.subr.mxu0 %v2186
    %2242 = vmatpush1.msra.mxu0 %v2185
    %2243 = vmatprep.subr.mxu0 0.0
    %2244 = vmatpush1.msra.mxu0 0.0
    %2245 = vmatprep.subr.mxu0 0.0
    %2246 = vmatpush1.msra.mxu0 0.0
    %2247 = vmatprep.subr.mxu0 0.0
    %2248 = vmatpush1.msra.mxu0 0.0
    %2249 = vmatprep.subr.mxu0 0.0
    %2250 = vmatpush1.msra.mxu0 0.0
    %2251 = vmatprep.subr.mxu0 0.0
    %2252 = vmatpush1.msra.mxu0 0.0
    %2253 = vmatprep.subr.mxu0 0.0
    %2254 = vmatpush1.msra.mxu0 0.0
    %2255 = vmatprep.subr.mxu0 0.0
    %2256 = vmatpush1.msra.mxu0 0.0
    %2257 = vmatprep.subr.mxu0 0.0
    %2258 = vmatpush1.msra.mxu0 0.0
    %2259 = vmatprep.subr.mxu0 0.0
    %2260 = vmatpush1.msra.mxu0 0.0
    %2261 = vmatprep.subr.mxu0 0.0
    %2262 = vmatpush1.msra.mxu0 0.0
    %2263 = vmatprep.subr.mxu0 0.0
    %2264 = vmatpush1.msra.mxu0 0.0
    %2265 = vmatprep.subr.mxu0 0.0
    %2266 = vmatpush1.msra.mxu0 0.0
    %2267 = vmatprep.subr.mxu0 0.0
    %2268 = vmatpush1.msra.mxu0 0.0
    %2269 = vmatprep.subr.mxu0 0.0
    %2270 = vmatpush1.msra.mxu0 0.0
    %2271 = vmatprep.subr.mxu0 0.0
    %2272 = vmatpush1.msra.mxu0 0.0
    %2273 = vmatprep.subr.mxu0 0.0
    %2274 = vmatpush1.msra.mxu0 0.0
    %2275 = vmatprep.subr.mxu0 0.0
    %2276 = vmatpush1.msra.mxu0 0.0
    %2277 = vmatprep.subr.mxu0 0.0
    %2278 = vmatpush1.msra.mxu0 0.0
    %2279 = vmatprep.subr.mxu0 0.0
    %2280 = vmatpush1.msra.mxu0 0.0
    %2281 = vmatprep.subr.mxu0 0.0
    %2282 = vmatpush1.msra.mxu0 0.0
    %2283 = vmatprep.subr.mxu0 0.0
    %2284 = vmatpush1.msra.mxu0 0.0
    %2285 = vmatprep.subr.mxu0 0.0
    %2286 = vmatpush1.msra.mxu0 0.0
    %2287 = vmatprep.subr.mxu0 0.0
    %2288 = vmatpush1.msra.mxu0 0.0
    %2289 = vmatprep.subr.mxu0 0.0
    %2290 = vmatpush1.msra.mxu0 0.0
    %2291 = vmatprep.subr.mxu0 0.0
    %2292 = vmatpush1.msra.mxu0 0.0
    %2293 = vmatprep.subr.mxu0 0.0
    %2294 = vmatpush1.msra.mxu0 0.0
    %2295 = vmatprep.subr.mxu0 0.0
    %2296 = vmatpush1.msra.mxu0 0.0
    %2297 = vmatprep.subr.mxu0 0.0
    %2298 = vmatpush1.msra.mxu0 0.0
    %2299 = vmatprep.mubr.f32.mxu0 0.0
    %2300 = vmatmul.mubr.f32.gmra.mrb[0].mxu0 %v2224
    %v2301 = vpop.f32.mrb[0].mxu0
    %v2302 = vadd.f32 %v2206, %v2301
    %v2303 = vpop.f32.mrb[0].mxu0
    %v2304 = vadd.f32 %v2206, %v2303
    %2305 = vmatprep.mubr.f32.mxu0 0.0
    %2306 = vmatmul.mubr.f32.gmra.mrb[0].mxu0 %v2227
    %v2307 = vpop.f32.mrb[0].mxu0
    %v2308 = vadd.f32 %v2211, %v2307
    %v2309 = vpop.f32.mrb[0].mxu0
    %v2310 = vadd.f32 %v2211, %v2309
    %2311 = vmatprep.mubr.f32.mxu0 0.0
    %2312 = vmatmul.mubr.f32.gmra.mrb[0].mxu0 %v2230
    %v2313 = vpop.f32.mrb[0].mxu0
    %v2314 = vadd.f32 %v2216, %v2313
    %v2315 = vpop.f32.mrb[0].mxu0
    %v2316 = vadd.f32 %v2216, %v2315
    %2317 = vmatprep.mubr.f32.mxu0 0.0
    %2318 = vmatmul.mubr.f32.gmra.mrb[0].mxu0 %v2233
    %v2319 = vpop.f32.mrb[0].mxu0
    %v2320 = vadd.f32 %v2221, %v2319
    %v2321 = vpop.f32.mrb[0].mxu0
    %v2322 = vadd.f32 %v2221, %v2321
    %2323 = vdwg.mxu0
    %2324 = vmatprep.subr.mxu0 %v2158
    %2325 = vmatpush1.msra.mxu0 %v2157
    %2326 = vmatprep.subr.mxu0 %v2168
    %2327 = vmatpush1.msra.mxu0 %v2167
    %2328 = vmatprep.subr.mxu0 %v2178
    %2329 = vmatpush1.msra.mxu0 %v2177
    %2330 = vmatprep.subr.mxu0 %v2188
    %2331 = vmatpush1.msra.mxu0 %v2187
    %2332 = vmatprep.subr.mxu0 0.0
    %2333 = vmatpush1.msra.mxu0 0.0
    %2334 = vmatprep.subr.mxu0 0.0
    %2335 = vmatpush1.msra.mxu0 0.0
    %2336 = vmatprep.subr.mxu0 0.0
    %2337 = vmatpush1.msra.mxu0 0.0
    %2338 = vmatprep.subr.mxu0 0.0
    %2339 = vmatpush1.msra.mxu0 0.0
    %2340 = vmatprep.subr.mxu0 0.0
    %2341 = vmatpush1.msra.mxu0 0.0
    %2342 = vmatprep.subr.mxu0 0.0
    %2343 = vmatpush1.msra.mxu0 0.0
    %2344 = vmatprep.subr.mxu0 0.0
    %2345 = vmatpush1.msra.mxu0 0.0
    %2346 = vmatprep.subr.mxu0 0.0
    %2347 = vmatpush1.msra.mxu0 0.0
    %2348 = vmatprep.subr.mxu0 0.0
    %2349 = vmatpush1.msra.mxu0 0.0
    %2350 = vmatprep.subr.mxu0 0.0
    %2351 = vmatpush1.msra.mxu0 0.0
    %2352 = vmatprep.subr.mxu0 0.0
    %2353 = vmatpush1.msra.mxu0 0.0
    %2354 = vmatprep.subr.mxu0 0.0
    %2355 = vmatpush1.msra.mxu0 0.0
    %2356 = vmatprep.subr.mxu0 0.0
    %2357 = vmatpush1.msra.mxu0 0.0
    %2358 = vmatprep.subr.mxu0 0.0
    %2359 = vmatpush1.msra.mxu0 0.0
    %2360 = vmatprep.subr.mxu0 0.0
    %2361 = vmatpush1.msra.mxu0 0.0
    %2362 = vmatprep.subr.mxu0 0.0
    %2363 = vmatpush1.msra.mxu0 0.0
    %2364 = vmatprep.subr.mxu0 0.0
    %2365 = vmatpush1.msra.mxu0 0.0
    %2366 = vmatprep.subr.mxu0 0.0
    %2367 = vmatpush1.msra.mxu0 0.0
    %2368 = vmatprep.subr.mxu0 0.0
    %2369 = vmatpush1.msra.mxu0 0.0
    %2370 = vmatprep.subr.mxu0 0.0
    %2371 = vmatpush1.msra.mxu0 0.0
    %2372 = vmatprep.subr.mxu0 0.0
    %2373 = vmatpush1.msra.mxu0 0.0
    %2374 = vmatprep.subr.mxu0 0.0
    %2375 = vmatpush1.msra.mxu0 0.0
    %2376 = vmatprep.subr.mxu0 0.0
    %2377 = vmatpush1.msra.mxu0 0.0
    %2378 = vmatprep.subr.mxu0 0.0
    %2379 = vmatpush1.msra.mxu0 0.0
    %2380 = vmatprep.subr.mxu0 0.0
    %2381 = vmatpush1.msra.mxu0 0.0
    %2382 = vmatprep.subr.mxu0 0.0
    %2383 = vmatpush1.msra.mxu0 0.0
    %2384 = vmatprep.subr.mxu0 0.0
    %2385 = vmatpush1.msra.mxu0 0.0
    %2386 = vmatprep.subr.mxu0 0.0
    %2387 = vmatpush1.msra.mxu0 0.0
    %2388 = vmatprep.mubr.f32.mxu0 0.0
    %2389 = vmatmul.mubr.f32.gmra.mrb[0].mxu0 %v2224
    %v2390 = vpop.f32.mrb[0].mxu0
    %v2391 = vadd.f32 %v2206, %v2390
    %v2392 = vpop.f32.mrb[0].mxu0
    %v2393 = vadd.f32 %v2206, %v2392
    %2394 = vmatprep.mubr.f32.mxu0 0.0
    %2395 = vmatmul.mubr.f32.gmra.mrb[0].mxu0 %v2227
    %v2396 = vpop.f32.mrb[0].mxu0
    %v2397 = vadd.f32 %v2211, %v2396
    %v2398 = vpop.f32.mrb[0].mxu0
    %v2399 = vadd.f32 %v2211, %v2398
    %2400 = vmatprep.mubr.f32.mxu0 0.0
    %2401 = vmatmul.mubr.f32.gmra.mrb[0].mxu0 %v2230
    %v2402 = vpop.f32.mrb[0].mxu0
    %v2403 = vadd.f32 %v2216, %v2402
    %v2404 = vpop.f32.mrb[0].mxu0
    %v2405 = vadd.f32 %v2216, %v2404
    %2406 = vmatprep.mubr.f32.mxu0 0.0
    %2407 = vmatmul.mubr.f32.gmra.mrb[0].mxu0 %v2233
    %v2408 = vpop.f32.mrb[0].mxu0
    %v2409 = vadd.f32 %v2221, %v2408
    %v2410 = vpop.f32.mrb[0].mxu0
    %v2411 = vadd.f32 %v2221, %v2410
    %2412 = vdwg.mxu0
    %2413 = vmatprep.subr.mxu0 %v2160
    %2414 = vmatpush1.msra.mxu0 %v2159
    %2415 = vmatprep.subr.mxu0 %v2170
    %2416 = vmatpush1.msra.mxu0 %v2169
    %2417 = vmatprep.subr.mxu0 %v2180
    %2418 = vmatpush1.msra.mxu0 %v2179
    %2419 = vmatprep.subr.mxu0 %v2190
    %2420 = vmatpush1.msra.mxu0 %v2189
    %2421 = vmatprep.subr.mxu0 0.0
    %2422 = vmatpush1.msra.mxu0 0.0
    %2423 = vmatprep.subr.mxu0 0.0
    %2424 = vmatpush1.msra.mxu0 0.0
    %2425 = vmatprep.subr.mxu0 0.0
    %2426 = vmatpush1.msra.mxu0 0.0
    %2427 = vmatprep.subr.mxu0 0.0
    %2428 = vmatpush1.msra.mxu0 0.0
    %2429 = vmatprep.subr.mxu0 0.0
    %2430 = vmatpush1.msra.mxu0 0.0
    %2431 = vmatprep.subr.mxu0 0.0
    %2432 = vmatpush1.msra.mxu0 0.0
    %2433 = vmatprep.subr.mxu0 0.0
    %2434 = vmatpush1.msra.mxu0 0.0
    %2435 = vmatprep.subr.mxu0 0.0
    %2436 = vmatpush1.msra.mxu0 0.0
    %2437 = vmatprep.subr.mxu0 0.0
    %2438 = vmatpush1.msra.mxu0 0.0
    %2439 = vmatprep.subr.mxu0 0.0
    %2440 = vmatpush1.msra.mxu0 0.0
    %2441 = vmatprep.subr.mxu0 0.0
    %2442 = vmatpush1.msra.mxu0 0.0
    %2443 = vmatprep.subr.mxu0 0.0
    %2444 = vmatpush1.msra.mxu0 0.0
    %2445 = vmatprep.subr.mxu0 0.0
    %2446 = vmatpush1.msra.mxu0 0.0
    %2447 = vmatprep.subr.mxu0 0.0
    %2448 = vmatpush1.msra.mxu0 0.0
    %2449 = vmatprep.subr.mxu0 0.0
    %2450 = vmatpush1.msra.mxu0 0.0
    %2451 = vmatprep.subr.mxu0 0.0
    %2452 = vmatpush1.msra.mxu0 0.0
    %2453 = vmatprep.subr.mxu0 0.0
    %2454 = vmatpush1.msra.mxu0 0.0
    %2455 = vmatprep.subr.mxu0 0.0
    %2456 = vmatpush1.msra.mxu0 0.0
    %2457 = vmatprep.subr.mxu0 0.0
    %2458 = vmatpush1.msra.mxu0 0.0
    %2459 = vmatprep.subr.mxu0 0.0
    %2460 = vmatpush1.msra.mxu0 0.0
    %2461 = vmatprep.subr.mxu0 0.0
    %2462 = vmatpush1.msra.mxu0 0.0
    %2463 = vmatprep.subr.mxu0 0.0
    %2464 = vmatpush1.msra.mxu0 0.0
    %2465 = vmatprep.subr.mxu0 0.0
    %2466 = vmatpush1.msra.mxu0 0.0
    %2467 = vmatprep.subr.mxu0 0.0
    %2468 = vmatpush1.msra.mxu0 0.0
    %2469 = vmatprep.subr.mxu0 0.0
    %2470 = vmatpush1.msra.mxu0 0.0
    %2471 = vmatprep.subr.mxu0 0.0
    %2472 = vmatpush1.msra.mxu0 0.0
    %2473 = vmatprep.subr.mxu0 0.0
    %2474 = vmatpush1.msra.mxu0 0.0
    %2475 = vmatprep.subr.mxu0 0.0
    %2476 = vmatpush1.msra.mxu0 0.0
    %2477 = vmatprep.mubr.f32.mxu0 0.0
    %2478 = vmatmul.mubr.f32.gmra.mrb[0].mxu0 %v2224
    %v2479 = vpop.f32.mrb[0].mxu0
    %v2480 = vadd.f32 %v2206, %v2479
    %v2481 = vpop.f32.mrb[0].mxu0
    %v2482 = vadd.f32 %v2206, %v2481
    %2483 = vmatprep.mubr.f32.mxu0 0.0
    %2484 = vmatmul.mubr.f32.gmra.mrb[0].mxu0 %v2227
    %v2485 = vpop.f32.mrb[0].mxu0
    %v2486 = vadd.f32 %v2211, %v2485
    %v2487 = vpop.f32.mrb[0].mxu0
    %v2488 = vadd.f32 %v2211, %v2487
    %2489 = vmatprep.mubr.f32.mxu0 0.0
    %2490 = vmatmul.mubr.f32.gmra.mrb[0].mxu0 %v2230
    %v2491 = vpop.f32.mrb[0].mxu0
    %v2492 = vadd.f32 %v2216, %v2491
    %v2493 = vpop.f32.mrb[0].mxu0
    %v2494 = vadd.f32 %v2216, %v2493
    %2495 = vmatprep.mubr.f32.mxu0 0.0
    %2496 = vmatmul.mubr.f32.gmra.mrb[0].mxu0 %v2233
    %v2497 = vpop.f32.mrb[0].mxu0
    %v2498 = vadd.f32 %v2221, %v2497
    %v2499 = vpop.f32.mrb[0].mxu0
    %v2500 = vadd.f32 %v2221, %v2499
    %2501 = vdwg.mxu0
    %2502 = vmatprep.subr.mxu0 %v2162
    %2503 = vmatpush1.msra.mxu0 %v2161
    %2504 = vmatprep.subr.mxu0 %v2172
    %2505 = vmatpush1.msra.mxu0 %v2171
    %2506 = vmatprep.subr.mxu0 %v2182
    %2507 = vmatpush1.msra.mxu0 %v2181
    %2508 = vmatprep.subr.mxu0 %v2192
    %2509 = vmatpush1.msra.mxu0 %v2191
    %2510 = vmatprep.subr.mxu0 0.0
    %2511 = vmatpush1.msra.mxu0 0.0
    %2512 = vmatprep.subr.mxu0 0.0
    %2513 = vmatpush1.msra.mxu0 0.0
    %2514 = vmatprep.subr.mxu0 0.0
    %2515 = vmatpush1.msra.mxu0 0.0
    %2516 = vmatprep.subr.mxu0 0.0
    %2517 = vmatpush1.msra.mxu0 0.0
    %2518 = vmatprep.subr.mxu0 0.0
    %2519 = vmatpush1.msra.mxu0 0.0
    %2520 = vmatprep.subr.mxu0 0.0
    %2521 = vmatpush1.msra.mxu0 0.0
    %2522 = vmatprep.subr.mxu0 0.0
    %2523 = vmatpush1.msra.mxu0 0.0
    %2524 = vmatprep.subr.mxu0 0.0
    %2525 = vmatpush1.msra.mxu0 0.0
    %2526 = vmatprep.subr.mxu0 0.0
    %2527 = vmatpush1.msra.mxu0 0.0
    %2528 = vmatprep.subr.mxu0 0.0
    %2529 = vmatpush1.msra.mxu0 0.0
    %2530 = vmatprep.subr.mxu0 0.0
    %2531 = vmatpush1.msra.mxu0 0.0
    %2532 = vmatprep.subr.mxu0 0.0
    %2533 = vmatpush1.msra.mxu0 0.0
    %2534 = vmatprep.subr.mxu0 0.0
    %2535 = vmatpush1.msra.mxu0 0.0
    %2536 = vmatprep.subr.mxu0 0.0
    %2537 = vmatpush1.msra.mxu0 0.0
    %2538 = vmatprep.subr.mxu0 0.0
    %2539 = vmatpush1.msra.mxu0 0.0
    %2540 = vmatprep.subr.mxu0 0.0
    %2541 = vmatpush1.msra.mxu0 0.0
    %2542 = vmatprep.subr.mxu0 0.0
    %2543 = vmatpush1.msra.mxu0 0.0
    %2544 = vmatprep.subr.mxu0 0.0
    %2545 = vmatpush1.msra.mxu0 0.0
    %2546 = vmatprep.subr.mxu0 0.0
    %2547 = vmatpush1.msra.mxu0 0.0
    %2548 = vmatprep.subr.mxu0 0.0
    %2549 = vmatpush1.msra.mxu0 0.0
    %2550 = vmatprep.subr.mxu0 0.0
    %2551 = vmatpush1.msra.mxu0 0.0
    %2552 = vmatprep.subr.mxu0 0.0
    %2553 = vmatpush1.msra.mxu0 0.0
    %2554 = vmatprep.subr.mxu0 0.0
    %2555 = vmatpush1.msra.mxu0 0.0
    %2556 = vmatprep.subr.mxu0 0.0
    %2557 = vmatpush1.msra.mxu0 0.0
    %2558 = vmatprep.subr.mxu0 0.0
    %2559 = vmatpush1.msra.mxu0 0.0
    %2560 = vmatprep.subr.mxu0 0.0
    %2561 = vmatpush1.msra.mxu0 0.0
    %2562 = vmatprep.subr.mxu0 0.0
    %2563 = vmatpush1.msra.mxu0 0.0
    %2564 = vmatprep.subr.mxu0 0.0
    %2565 = vmatpush1.msra.mxu0 0.0
    %2566 = vmatprep.mubr.f32.mxu0 0.0
    %2567 = vmatmul.mubr.f32.gmra.mrb[0].mxu0 %v2224
    %v2568 = vpop.f32.mrb[0].mxu0
    %v2569 = vadd.f32 %v2206, %v2568
    %v2570 = vpop.f32.mrb[0].mxu0
    %v2571 = vadd.f32 %v2206, %v2570
    %2572 = vmatprep.mubr.f32.mxu0 0.0
    %2573 = vmatmul.mubr.f32.gmra.mrb[0].mxu0 %v2227
    %v2574 = vpop.f32.mrb[0].mxu0
    %v2575 = vadd.f32 %v2211, %v2574
    %v2576 = vpop.f32.mrb[0].mxu0
    %v2577 = vadd.f32 %v2211, %v2576
    %2578 = vmatprep.mubr.f32.mxu0 0.0
    %2579 = vmatmul.mubr.f32.gmra.mrb[0].mxu0 %v2230
    %v2580 = vpop.f32.mrb[0].mxu0
    %v2581 = vadd.f32 %v2216, %v2580
    %v2582 = vpop.f32.mrb[0].mxu0
    %v2583 = vadd.f32 %v2216, %v2582
    %2584 = vmatprep.mubr.f32.mxu0 0.0
    %2585 = vmatmul.mubr.f32.gmra.mrb[0].mxu0 %v2233
    %v2586 = vpop.f32.mrb[0].mxu0
    %v2587 = vadd.f32 %v2221, %v2586
    %v2588 = vpop.f32.mrb[0].mxu0
    %v2589 = vadd.f32 %v2221, %v2588
    %2590 = vdwg.mxu0
    %2591 = vmatprep.subr.mxu0 %v2164
    %2592 = vmatpush1.msra.mxu0 %v2163
    %2593 = vmatprep.subr.mxu0 %v2174
    %2594 = vmatpush1.msra.mxu0 %v2173
    %2595 = vmatprep.subr.mxu0 %v2184
    %2596 = vmatpush1.msra.mxu0 %v2183
    %2597 = vmatprep.subr.mxu0 %v2194
    %2598 = vmatpush1.msra.mxu0 %v2193
    %2599 = vmatprep.subr.mxu0 0.0
    %2600 = vmatpush1.msra.mxu0 0.0
    %2601 = vmatprep.subr.mxu0 0.0
    %2602 = vmatpush1.msra.mxu0 0.0
    %2603 = vmatprep.subr.mxu0 0.0
    %2604 = vmatpush1.msra.mxu0 0.0
    %2605 = vmatprep.subr.mxu0 0.0
    %2606 = vmatpush1.msra.mxu0 0.0
    %2607 = vmatprep.subr.mxu0 0.0
    %2608 = vmatpush1.msra.mxu0 0.0
    %2609 = vmatprep.subr.mxu0 0.0
    %2610 = vmatpush1.msra.mxu0 0.0
    %2611 = vmatprep.subr.mxu0 0.0
    %2612 = vmatpush1.msra.mxu0 0.0
    %2613 = vmatprep.subr.mxu0 0.0
    %2614 = vmatpush1.msra.mxu0 0.0
    %2615 = vmatprep.subr.mxu0 0.0
    %2616 = vmatpush1.msra.mxu0 0.0
    %2617 = vmatprep.subr.mxu0 0.0
    %2618 = vmatpush1.msra.mxu0 0.0
    %2619 = vmatprep.subr.mxu0 0.0
    %2620 = vmatpush1.msra.mxu0 0.0
    %2621 = vmatprep.subr.mxu0 0.0
    %2622 = vmatpush1.msra.mxu0 0.0
    %2623 = vmatprep.subr.mxu0 0.0
    %2624 = vmatpush1.msra.mxu0 0.0
    %2625 = vmatprep.subr.mxu0 0.0
    %2626 = vmatpush1.msra.mxu0 0.0
    %2627 = vmatprep.subr.mxu0 0.0
    %2628 = vmatpush1.msra.mxu0 0.0
    %2629 = vmatprep.subr.mxu0 0.0
    %2630 = vmatpush1.msra.mxu0 0.0
    %2631 = vmatprep.subr.mxu0 0.0
    %2632 = vmatpush1.msra.mxu0 0.0
    %2633 = vmatprep.subr.mxu0 0.0
    %2634 = vmatpush1.msra.mxu0 0.0
    %2635 = vmatprep.subr.mxu0 0.0
    %2636 = vmatpush1.msra.mxu0 0.0
    %2637 = vmatprep.subr.mxu0 0.0
    %2638 = vmatpush1.msra.mxu0 0.0
    %2639 = vmatprep.subr.mxu0 0.0
    %2640 = vmatpush1.msra.mxu0 0.0
    %2641 = vmatprep.subr.mxu0 0.0
    %2642 = vmatpush1.msra.mxu0 0.0
    %2643 = vmatprep.subr.mxu0 0.0
    %2644 = vmatpush1.msra.mxu0 0.0
    %2645 = vmatprep.subr.mxu0 0.0
    %2646 = vmatpush1.msra.mxu0 0.0
    %2647 = vmatprep.subr.mxu0 0.0
    %2648 = vmatpush1.msra.mxu0 0.0
    %2649 = vmatprep.subr.mxu0 0.0
    %2650 = vmatpush1.msra.mxu0 0.0
    %2651 = vmatprep.subr.mxu0 0.0
    %2652 = vmatpush1.msra.mxu0 0.0
    %2653 = vmatprep.subr.mxu0 0.0
    %2654 = vmatpush1.msra.mxu0 0.0
    %2655 = vmatprep.mubr.f32.mxu0 0.0
    %2656 = vmatmul.mubr.f32.gmra.mrb[0].mxu0 %v2224
    %v2657 = vpop.f32.mrb[0].mxu0
    %v2658 = vadd.f32 %v2206, %v2657
    %v2659 = vpop.f32.mrb[0].mxu0
    %v2660 = vadd.f32 %v2206, %v2659
    %2661 = vmatprep.mubr.f32.mxu0 0.0
    %2662 = vmatmul.mubr.f32.gmra.mrb[0].mxu0 %v2227
    %v2663 = vpop.f32.mrb[0].mxu0
    %v2664 = vadd.f32 %v2211, %v2663
    %v2665 = vpop.f32.mrb[0].mxu0
    %v2666 = vadd.f32 %v2211, %v2665
    %2667 = vmatprep.mubr.f32.mxu0 0.0
    %2668 = vmatmul.mubr.f32.gmra.mrb[0].mxu0 %v2230
    %v2669 = vpop.f32.mrb[0].mxu0
    %v2670 = vadd.f32 %v2216, %v2669
    %v2671 = vpop.f32.mrb[0].mxu0
    %v2672 = vadd.f32 %v2216, %v2671
    %2673 = vmatprep.mubr.f32.mxu0 0.0
    %2674 = vmatmul.mubr.f32.gmra.mrb[0].mxu0 %v2233
    %v2675 = vpop.f32.mrb[0].mxu0
    %v2676 = vadd.f32 %v2221, %v2675
    %v2677 = vpop.f32.mrb[0].mxu0
    %v2678 = vadd.f32 %v2221, %v2677
    %2679 = vdwg.mxu0
    %v2680 = vmax.f32 %v2302, 0.0
    %v2681 = vmax.f32 %v2304, 0.0
    %v2682 = vmax.f32 %v2391, 0.0
    %v2683 = vmax.f32 %v2393, 0.0
    %v2684 = vmax.f32 %v2480, 0.0
    %v2685 = vmax.f32 %v2482, 0.0
    %v2686 = vmax.f32 %v2569, 0.0
    %v2687 = vmax.f32 %v2571, 0.0
    %v2688 = vmax.f32 %v2658, 0.0
    %v2689 = vmax.f32 %v2660, 0.0
    %v2690 = vmax.f32 %v2308, 0.0
    %v2691 = vmax.f32 %v2310, 0.0
    %v2692 = vmax.f32 %v2397, 0.0
    %v2693 = vmax.f32 %v2399, 0.0
    %v2694 = vmax.f32 %v2486, 0.0
    %v2695 = vmax.f32 %v2488, 0.0
    %v2696 = vmax.f32 %v2575, 0.0
    %v2697 = vmax.f32 %v2577, 0.0
    %v2698 = vmax.f32 %v2664, 0.0
    %v2699 = vmax.f32 %v2666, 0.0
    %v2700 = vmax.f32 %v2314, 0.0
    %v2701 = vmax.f32 %v2316, 0.0
    %v2702 = vmax.f32 %v2403, 0.0
    %v2703 = vmax.f32 %v2405, 0.0
    %v2704 = vmax.f32 %v2492, 0.0
    %v2705 = vmax.f32 %v2494, 0.0
    %v2706 = vmax.f32 %v2581, 0.0
    %v2707 = vmax.f32 %v2583, 0.0
    %v2708 = vmax.f32 %v2670, 0.0
    %v2709 = vmax.f32 %v2672, 0.0
    %v2710 = vmax.f32 %v2320, 0.0
    %v2711 = vmax.f32 %v2322, 0.0
    %v2712 = vmax.f32 %v2409, 0.0
    %v2713 = vmax.f32 %v2411, 0.0
    %v2714 = vmax.f32 %v2498, 0.0
    %v2715 = vmax.f32 %v2500, 0.0
    %v2716 = vmax.f32 %v2587, 0.0
    %v2717 = vmax.f32 %v2589, 0.0
    %v2718 = vmax.f32 %v2676, 0.0
    %v2719 = vmax.f32 %v2678, 0.0
    %v2720 = vld [vmem:[%s2 + $0x60] sm:$0x3]
    %v2721 = vld [vmem:[%s3 + $0x80] sm:$0x3]
    %2723 = vset.pattern.permute.xlu0 0
    %2724 = vperm.xlu0 %2723, %v2721
    %v2725 = vpop.permute.xlu0 %2724
    %v2728 = vsel %vm1172, %v2720, 0
    %2730 = vmatprep.subr.mxu0 %v2681
    %2731 = vmatpush1.msra.mxu0 %v2680
    %2732 = vmatprep.subr.mxu0 %v2691
    %2733 = vmatpush1.msra.mxu0 %v2690
    %2734 = vmatprep.subr.mxu0 %v2701
    %2735 = vmatpush1.msra.mxu0 %v2700
    %2736 = vmatprep.subr.mxu0 %v2711
    %2737 = vmatpush1.msra.mxu0 %v2710
    %2738 = vmatprep.subr.mxu0 0.0
    %2739 = vmatpush1.msra.mxu0 0.0
    %2740 = vmatprep.subr.mxu0 0.0
    %2741 = vmatpush1.msra.mxu0 0.0
    %2742 = vmatprep.subr.mxu0 0.0
    %2743 = vmatpush1.msra.mxu0 0.0
    %2744 = vmatprep.subr.mxu0 0.0
    %2745 = vmatpush1.msra.mxu0 0.0
    %2746 = vmatprep.subr.mxu0 0.0
    %2747 = vmatpush1.msra.mxu0 0.0
    %2748 = vmatprep.subr.mxu0 0.0
    %2749 = vmatpush1.msra.mxu0 0.0
    %2750 = vmatprep.subr.mxu0 0.0
    %2751 = vmatpush1.msra.mxu0 0.0
    %2752 = vmatprep.subr.mxu0 0.0
    %2753 = vmatpush1.msra.mxu0 0.0
    %2754 = vmatprep.subr.mxu0 0.0
    %2755 = vmatpush1.msra.mxu0 0.0
    %2756 = vmatprep.subr.mxu0 0.0
    %2757 = vmatpush1.msra.mxu0 0.0
    %2758 = vmatprep.subr.mxu0 0.0
    %2759 = vmatpush1.msra.mxu0 0.0
    %2760 = vmatprep.subr.mxu0 0.0
    %2761 = vmatpush1.msra.mxu0 0.0
    %2762 = vmatprep.subr.mxu0 0.0
    %2763 = vmatpush1.msra.mxu0 0.0
    %2764 = vmatprep.subr.mxu0 0.0
    %2765 = vmatpush1.msra.mxu0 0.0
    %2766 = vmatprep.subr.mxu0 0.0
    %2767 = vmatpush1.msra.mxu0 0.0
    %2768 = vmatprep.subr.mxu0 0.0
    %2769 = vmatpush1.msra.mxu0 0.0
    %2770 = vmatprep.subr.mxu0 0.0
    %2771 = vmatpush1.msra.mxu0 0.0
    %2772 = vmatprep.subr.mxu0 0.0
    %2773 = vmatpush1.msra.mxu0 0.0
    %2774 = vmatprep.subr.mxu0 0.0
    %2775 = vmatpush1.msra.mxu0 0.0
    %2776 = vmatprep.subr.mxu0 0.0
    %2777 = vmatpush1.msra.mxu0 0.0
    %2778 = vmatprep.subr.mxu0 0.0
    %2779 = vmatpush1.msra.mxu0 0.0
    %2780 = vmatprep.subr.mxu0 0.0
    %2781 = vmatpush1.msra.mxu0 0.0
    %2782 = vmatprep.subr.mxu0 0.0
    %2783 = vmatpush1.msra.mxu0 0.0
    %2784 = vmatprep.subr.mxu0 0.0
    %2785 = vmatpush1.msra.mxu0 0.0
    %2786 = vmatprep.subr.mxu0 0.0
    %2787 = vmatpush1.msra.mxu0 0.0
    %2788 = vmatprep.subr.mxu0 0.0
    %2789 = vmatpush1.msra.mxu0 0.0
    %2790 = vmatprep.subr.mxu0 0.0
    %2791 = vmatpush1.msra.mxu0 0.0
    %2792 = vmatprep.subr.mxu0 0.0
    %2793 = vmatpush1.msra.mxu0 0.0
    %2794 = vmatprep.mubr.f32.mxu0 0.0
    %2795 = vmatmul.mubr.f32.gmra.mrb[0].mxu0 %v2728
    %v2796 = vpop.f32.mrb[0].mxu0
    %v2797 = vadd.f32 %v2725, %v2796
    %v2798 = vpop.f32.mrb[0].mxu0
    %v2799 = vadd.f32 %v2725, %v2798
    %2800 = vdwg.mxu0
    %2801 = vmatprep.subr.mxu0 %v2683
    %2802 = vmatpush1.msra.mxu0 %v2682
    %2803 = vmatprep.subr.mxu0 %v2693
    %2804 = vmatpush1.msra.mxu0 %v2692
    %2805 = vmatprep.subr.mxu0 %v2703
    %2806 = vmatpush1.msra.mxu0 %v2702
    %2807 = vmatprep.subr.mxu0 %v2713
    %2808 = vmatpush1.msra.mxu0 %v2712
    %2809 = vmatprep.subr.mxu0 0.0
    %2810 = vmatpush1.msra.mxu0 0.0
    %2811 = vmatprep.subr.mxu0 0.0
    %2812 = vmatpush1.msra.mxu0 0.0
    %2813 = vmatprep.subr.mxu0 0.0
    %2814 = vmatpush1.msra.mxu0 0.0
    %2815 = vmatprep.subr.mxu0 0.0
    %2816 = vmatpush1.msra.mxu0 0.0
    %2817 = vmatprep.subr.mxu0 0.0
    %2818 = vmatpush1.msra.mxu0 0.0
    %2819 = vmatprep.subr.mxu0 0.0
    %2820 = vmatpush1.msra.mxu0 0.0
    %2821 = vmatprep.subr.mxu0 0.0
    %2822 = vmatpush1.msra.mxu0 0.0
    %2823 = vmatprep.subr.mxu0 0.0
    %2824 = vmatpush1.msra.mxu0 0.0
    %2825 = vmatprep.subr.mxu0 0.0
    %2826 = vmatpush1.msra.mxu0 0.0
    %2827 = vmatprep.subr.mxu0 0.0
    %2828 = vmatpush1.msra.mxu0 0.0
    %2829 = vmatprep.subr.mxu0 0.0
    %2830 = vmatpush1.msra.mxu0 0.0
    %2831 = vmatprep.subr.mxu0 0.0
    %2832 = vmatpush1.msra.mxu0 0.0
    %2833 = vmatprep.subr.mxu0 0.0
    %2834 = vmatpush1.msra.mxu0 0.0
    %2835 = vmatprep.subr.mxu0 0.0
    %2836 = vmatpush1.msra.mxu0 0.0
    %2837 = vmatprep.subr.mxu0 0.0
    %2838 = vmatpush1.msra.mxu0 0.0
    %2839 = vmatprep.subr.mxu0 0.0
    %2840 = vmatpush1.msra.mxu0 0.0
    %2841 = vmatprep.subr.mxu0 0.0
    %2842 = vmatpush1.msra.mxu0 0.0
    %2843 = vmatprep.subr.mxu0 0.0
    %2844 = vmatpush1.msra.mxu0 0.0
    %2845 = vmatprep.subr.mxu0 0.0
    %2846 = vmatpush1.msra.mxu0 0.0
    %2847 = vmatprep.subr.mxu0 0.0
    %2848 = vmatpush1.msra.mxu0 0.0
    %2849 = vmatprep.subr.mxu0 0.0
    %2850 = vmatpush1.msra.mxu0 0.0
    %2851 = vmatprep.subr.mxu0 0.0
    %2852 = vmatpush1.msra.mxu0 0.0
    %2853 = vmatprep.subr.mxu0 0.0
    %2854 = vmatpush1.msra.mxu0 0.0
    %2855 = vmatprep.subr.mxu0 0.0
    %2856 = vmatpush1.msra.mxu0 0.0
    %2857 = vmatprep.subr.mxu0 0.0
    %2858 = vmatpush1.msra.mxu0 0.0
    %2859 = vmatprep.subr.mxu0 0.0
    %2860 = vmatpush1.msra.mxu0 0.0
    %2861 = vmatprep.subr.mxu0 0.0
    %2862 = vmatpush1.msra.mxu0 0.0
    %2863 = vmatprep.subr.mxu0 0.0
    %2864 = vmatpush1.msra.mxu0 0.0
    %2865 = vmatprep.mubr.f32.mxu0 0.0
    %2866 = vmatmul.mubr.f32.gmra.mrb[0].mxu0 %v2728
    %v2867 = vpop.f32.mrb[0].mxu0
    %v2868 = vadd.f32 %v2725, %v2867
    %v2869 = vpop.f32.mrb[0].mxu0
    %v2870 = vadd.f32 %v2725, %v2869
    %2871 = vdwg.mxu0
    %2872 = vmatprep.subr.mxu0 %v2685
    %2873 = vmatpush1.msra.mxu0 %v2684
    %2874 = vmatprep.subr.mxu0 %v2695
    %2875 = vmatpush1.msra.mxu0 %v2694
    %2876 = vmatprep.subr.mxu0 %v2705
    %2877 = vmatpush1.msra.mxu0 %v2704
    %2878 = vmatprep.subr.mxu0 %v2715
    %2879 = vmatpush1.msra.mxu0 %v2714
    %2880 = vmatprep.subr.mxu0 0.0
    %2881 = vmatpush1.msra.mxu0 0.0
    %2882 = vmatprep.subr.mxu0 0.0
    %2883 = vmatpush1.msra.mxu0 0.0
    %2884 = vmatprep.subr.mxu0 0.0
    %2885 = vmatpush1.msra.mxu0 0.0
    %2886 = vmatprep.subr.mxu0 0.0
    %2887 = vmatpush1.msra.mxu0 0.0
    %2888 = vmatprep.subr.mxu0 0.0
    %2889 = vmatpush1.msra.mxu0 0.0
    %2890 = vmatprep.subr.mxu0 0.0
    %2891 = vmatpush1.msra.mxu0 0.0
    %2892 = vmatprep.subr.mxu0 0.0
    %2893 = vmatpush1.msra.mxu0 0.0
    %2894 = vmatprep.subr.mxu0 0.0
    %2895 = vmatpush1.msra.mxu0 0.0
    %2896 = vmatprep.subr.mxu0 0.0
    %2897 = vmatpush1.msra.mxu0 0.0
    %2898 = vmatprep.subr.mxu0 0.0
    %2899 = vmatpush1.msra.mxu0 0.0
    %2900 = vmatprep.subr.mxu0 0.0
    %2901 = vmatpush1.msra.mxu0 0.0
    %2902 = vmatprep.subr.mxu0 0.0
    %2903 = vmatpush1.msra.mxu0 0.0
    %2904 = vmatprep.subr.mxu0 0.0
    %2905 = vmatpush1.msra.mxu0 0.0
    %2906 = vmatprep.subr.mxu0 0.0
    %2907 = vmatpush1.msra.mxu0 0.0
    %2908 = vmatprep.subr.mxu0 0.0
    %2909 = vmatpush1.msra.mxu0 0.0
    %2910 = vmatprep.subr.mxu0 0.0
    %2911 = vmatpush1.msra.mxu0 0.0
    %2912 = vmatprep.subr.mxu0 0.0
    %2913 = vmatpush1.msra.mxu0 0.0
    %2914 = vmatprep.subr.mxu0 0.0
    %2915 = vmatpush1.msra.mxu0 0.0
    %2916 = vmatprep.subr.mxu0 0.0
    %2917 = vmatpush1.msra.mxu0 0.0
    %2918 = vmatprep.subr.mxu0 0.0
    %2919 = vmatpush1.msra.mxu0 0.0
    %2920 = vmatprep.subr.mxu0 0.0
    %2921 = vmatpush1.msra.mxu0 0.0
    %2922 = vmatprep.subr.mxu0 0.0
    %2923 = vmatpush1.msra.mxu0 0.0
    %2924 = vmatprep.subr.mxu0 0.0
    %2925 = vmatpush1.msra.mxu0 0.0
    %2926 = vmatprep.subr.mxu0 0.0
    %2927 = vmatpush1.msra.mxu0 0.0
    %2928 = vmatprep.subr.mxu0 0.0
    %2929 = vmatpush1.msra.mxu0 0.0
    %2930 = vmatprep.subr.mxu0 0.0
    %2931 = vmatpush1.msra.mxu0 0.0
    %2932 = vmatprep.subr.mxu0 0.0
    %2933 = vmatpush1.msra.mxu0 0.0
    %2934 = vmatprep.subr.mxu0 0.0
    %2935 = vmatpush1.msra.mxu0 0.0
    %2936 = vmatprep.mubr.f32.mxu0 0.0
    %2937 = vmatmul.mubr.f32.gmra.mrb[0].mxu0 %v2728
    %v2938 = vpop.f32.mrb[0].mxu0
    %v2939 = vadd.f32 %v2725, %v2938
    %v2940 = vpop.f32.mrb[0].mxu0
    %v2941 = vadd.f32 %v2725, %v2940
    %2942 = vdwg.mxu0
    %2943 = vmatprep.subr.mxu0 %v2687
    %2944 = vmatpush1.msra.mxu0 %v2686
    %2945 = vmatprep.subr.mxu0 %v2697
    %2946 = vmatpush1.msra.mxu0 %v2696
    %2947 = vmatprep.subr.mxu0 %v2707
    %2948 = vmatpush1.msra.mxu0 %v2706
    %2949 = vmatprep.subr.mxu0 %v2717
    %2950 = vmatpush1.msra.mxu0 %v2716
    %2951 = vmatprep.subr.mxu0 0.0
    %2952 = vmatpush1.msra.mxu0 0.0
    %2953 = vmatprep.subr.mxu0 0.0
    %2954 = vmatpush1.msra.mxu0 0.0
    %2955 = vmatprep.subr.mxu0 0.0
    %2956 = vmatpush1.msra.mxu0 0.0
    %2957 = vmatprep.subr.mxu0 0.0
    %2958 = vmatpush1.msra.mxu0 0.0
    %2959 = vmatprep.subr.mxu0 0.0
    %2960 = vmatpush1.msra.mxu0 0.0
    %2961 = vmatprep.subr.mxu0 0.0
    %2962 = vmatpush1.msra.mxu0 0.0
    %2963 = vmatprep.subr.mxu0 0.0
    %2964 = vmatpush1.msra.mxu0 0.0
    %2965 = vmatprep.subr.mxu0 0.0
    %2966 = vmatpush1.msra.mxu0 0.0
    %2967 = vmatprep.subr.mxu0 0.0
    %2968 = vmatpush1.msra.mxu0 0.0
    %2969 = vmatprep.subr.mxu0 0.0
    %2970 = vmatpush1.msra.mxu0 0.0
    %2971 = vmatprep.subr.mxu0 0.0
    %2972 = vmatpush1.msra.mxu0 0.0
    %2973 = vmatprep.subr.mxu0 0.0
    %2974 = vmatpush1.msra.mxu0 0.0
    %2975 = vmatprep.subr.mxu0 0.0
    %2976 = vmatpush1.msra.mxu0 0.0
    %2977 = vmatprep.subr.mxu0 0.0
    %2978 = vmatpush1.msra.mxu0 0.0
    %2979 = vmatprep.subr.mxu0 0.0
    %2980 = vmatpush1.msra.mxu0 0.0
    %2981 = vmatprep.subr.mxu0 0.0
    %2982 = vmatpush1.msra.mxu0 0.0
    %2983 = vmatprep.subr.mxu0 0.0
    %2984 = vmatpush1.msra.mxu0 0.0
    %2985 = vmatprep.subr.mxu0 0.0
    %2986 = vmatpush1.msra.mxu0 0.0
    %2987 = vmatprep.subr.mxu0 0.0
    %2988 = vmatpush1.msra.mxu0 0.0
    %2989 = vmatprep.subr.mxu0 0.0
    %2990 = vmatpush1.msra.mxu0 0.0
    %2991 = vmatprep.subr.mxu0 0.0
    %2992 = vmatpush1.msra.mxu0 0.0
    %2993 = vmatprep.subr.mxu0 0.0
    %2994 = vmatpush1.msra.mxu0 0.0
    %2995 = vmatprep.subr.mxu0 0.0
    %2996 = vmatpush1.msra.mxu0 0.0
    %2997 = vmatprep.subr.mxu0 0.0
    %2998 = vmatpush1.msra.mxu0 0.0
    %2999 = vmatprep.subr.mxu0 0.0
    %3000 = vmatpush1.msra.mxu0 0.0
    %3001 = vmatprep.subr.mxu0 0.0
    %3002 = vmatpush1.msra.mxu0 0.0
    %3003 = vmatprep.subr.mxu0 0.0
    %3004 = vmatpush1.msra.mxu0 0.0
    %3005 = vmatprep.subr.mxu0 0.0
    %3006 = vmatpush1.msra.mxu0 0.0
    %3007 = vmatprep.mubr.f32.mxu0 0.0
    %3008 = vmatmul.mubr.f32.gmra.mrb[0].mxu0 %v2728
    %v3009 = vpop.f32.mrb[0].mxu0
    %v3010 = vadd.f32 %v2725, %v3009
    %v3011 = vpop.f32.mrb[0].mxu0
    %v3012 = vadd.f32 %v2725, %v3011
    %3013 = vdwg.mxu0
    %3014 = vmatprep.subr.mxu0 %v2689
    %3015 = vmatpush1.msra.mxu0 %v2688
    %3016 = vmatprep.subr.mxu0 %v2699
    %3017 = vmatpush1.msra.mxu0 %v2698
    %3018 = vmatprep.subr.mxu0 %v2709
    %3019 = vmatpush1.msra.mxu0 %v2708
    %3020 = vmatprep.subr.mxu0 %v2719
    %3021 = vmatpush1.msra.mxu0 %v2718
    %3022 = vmatprep.subr.mxu0 0.0
    %3023 = vmatpush1.msra.mxu0 0.0
    %3024 = vmatprep.subr.mxu0 0.0
    %3025 = vmatpush1.msra.mxu0 0.0
    %3026 = vmatprep.subr.mxu0 0.0
    %3027 = vmatpush1.msra.mxu0 0.0
    %3028 = vmatprep.subr.mxu0 0.0
    %3029 = vmatpush1.msra.mxu0 0.0
    %3030 = vmatprep.subr.mxu0 0.0
    %3031 = vmatpush1.msra.mxu0 0.0
    %3032 = vmatprep.subr.mxu0 0.0
    %3033 = vmatpush1.msra.mxu0 0.0
    %3034 = vmatprep.subr.mxu0 0.0
    %3035 = vmatpush1.msra.mxu0 0.0
    %3036 = vmatprep.subr.mxu0 0.0
    %3037 = vmatpush1.msra.mxu0 0.0
    %3038 = vmatprep.subr.mxu0 0.0
    %3039 = vmatpush1.msra.mxu0 0.0
    %3040 = vmatprep.subr.mxu0 0.0
    %3041 = vmatpush1.msra.mxu0 0.0
    %3042 = vmatprep.subr.mxu0 0.0
    %3043 = vmatpush1.msra.mxu0 0.0
    %3044 = vmatprep.subr.mxu0 0.0
    %3045 = vmatpush1.msra.mxu0 0.0
    %3046 = vmatprep.subr.mxu0 0.0
    %3047 = vmatpush1.msra.mxu0 0.0
    %3048 = vmatprep.subr.mxu0 0.0
    %3049 = vmatpush1.msra.mxu0 0.0
    %3050 = vmatprep.subr.mxu0 0.0
    %3051 = vmatpush1.msra.mxu0 0.0
    %3052 = vmatprep.subr.mxu0 0.0
    %3053 = vmatpush1.msra.mxu0 0.0
    %3054 = vmatprep.subr.mxu0 0.0
    %3055 = vmatpush1.msra.mxu0 0.0
    %3056 = vmatprep.subr.mxu0 0.0
    %3057 = vmatpush1.msra.mxu0 0.0
    %3058 = vmatprep.subr.mxu0 0.0
    %3059 = vmatpush1.msra.mxu0 0.0
    %3060 = vmatprep.subr.mxu0 0.0
    %3061 = vmatpush1.msra.mxu0 0.0
    %3062 = vmatprep.subr.mxu0 0.0
    %3063 = vmatpush1.msra.mxu0 0.0
    %3064 = vmatprep.subr.mxu0 0.0
    %3065 = vmatpush1.msra.mxu0 0.0
    %3066 = vmatprep.subr.mxu0 0.0
    %3067 = vmatpush1.msra.mxu0 0.0
    %3068 = vmatprep.subr.mxu0 0.0
    %3069 = vmatpush1.msra.mxu0 0.0
    %3070 = vmatprep.subr.mxu0 0.0
    %3071 = vmatpush1.msra.mxu0 0.0
    %3072 = vmatprep.subr.mxu0 0.0
    %3073 = vmatpush1.msra.mxu0 0.0
    %3074 = vmatprep.subr.mxu0 0.0
    %3075 = vmatpush1.msra.mxu0 0.0
    %3076 = vmatprep.subr.mxu0 0.0
    %3077 = vmatpush1.msra.mxu0 0.0
    %3078 = vmatprep.mubr.f32.mxu0 0.0
    %3079 = vmatmul.mubr.f32.gmra.mrb[0].mxu0 %v2728
    %v3080 = vpop.f32.mrb[0].mxu0
    %v3081 = vadd.f32 %v2725, %v3080
    %v3082 = vpop.f32.mrb[0].mxu0
    %v3083 = vadd.f32 %v2725, %v3082
    %3084 = vdwg.mxu0
    %v3095 = vcombine.low %v2797, %v2799
    %v3096 = vcombine.low %v2868, %v2870
    %v3098 = vunpack.c.l.s4 1983009808
    %v3099 = vunpack.c.0.s8 %v3098
    %v3100 = vlaneseq
    %v3101 = vshrl.u32 %v3100, 7
    %v3102 = vsub.s32 %v3099, %v3101
    %v3103 = vrot.slane %v3095, %v3102
    %v3105 = vunpack.c.l.s4 1983009808
    %v3106 = vunpack.c.0.s8 %v3105
    %v3107 = vlaneseq
    %v3108 = vshrl.u32 %v3107, 7
    %v3109 = vsub.s32 %v3106, %v3108
    %v3110 = vrot.slane %v3096, %v3109
    %v3111 = vcombine.low %v3103, %v3110
    %v3112 = vcombine.low %v2939, %v2941
    %v3113 = vcombine.low %v3010, %v3012
    %v3115 = vunpack.c.l.s4 1983009808
    %v3116 = vunpack.c.0.s8 %v3115
    %v3117 = vlaneseq
    %v3118 = vshrl.u32 %v3117, 7
    %v3119 = vsub.s32 %v3116, %v3118
    %v3120 = vrot.slane %v3112, %v3119
    %v3122 = vunpack.c.l.s4 1983009808
    %v3123 = vunpack.c.0.s8 %v3122
    %v3124 = vlaneseq
    %v3125 = vshrl.u32 %v3124, 7
    %v3126 = vsub.s32 %v3123, %v3125
    %v3127 = vrot.slane %v3113, %v3126
    %v3128 = vcombine.low %v3120, %v3127
    %v3129 = vcombine.low %v3081, %v3083
    %v3131 = vunpack.c.l.s4 1983009808
    %v3132 = vunpack.c.0.s8 %v3131
    %v3133 = vlaneseq
    %v3134 = vshrl.u32 %v3133, 7
    %v3135 = vsub.s32 %v3132, %v3134
    %v3136 = vrot.slane %v3129, %v3135
    %3140 = vst [vmem:[#allocation2] sm:$0xff] %v3111
    %3141 = vst [vmem:[#allocation2 + $0x8] sm:$0xff] %v3128
    %vm3142 = vcmask 1041408
    %vm3143 = vcmask 388098
    %vm3144 = vmor %vm3143, %vm3142
    %3145 = vst.msk [vmem:[#allocation2 + $0x10] sm:$0xf] %vm3144, %v3136
    // Predicated region
    $region18: #{tpu_custom_call.1} parent=1 // pred_check
      _
    $region19: #{tpu_custom_call.1} parent=1 // pred_check_branch
      %3147 = sbr.rel (0) target = $region21
    $region20: #{tpu_custom_call.1} parent=1 // pred_region
      %s3149 = ssub.s32 320, 320
      %3150 = vsyncadd [#allocation3], %s3149
      %s3152 = sshll.u32 [#allocation2], 4
      %s3153 = int_to_ptr.vmem [resolvable:$true] %s3152
      %3155 = dma.vmem_to_hbm [thread:$0]  %s3153, 320, %s4, [#allocation3]
    $region21: #{tpu_custom_call.1} parent=1 // pred_fallthru
      _
    // Predicated region
    $region22: #{tpu_custom_call.1} parent=1 // pred_check
      _
    $region23: #{tpu_custom_call.1} parent=1 // pred_check_branch
      %3157 = sbr.rel (0) target = $region25
    $region24: #{tpu_custom_call.1} parent=1 // pred_region
      %3158 = dma.done [#allocation3], 320
    $region25: #{tpu_custom_call.1} parent=1 // pred_fallthru
      _
    %3159 = vsyncpa [#allocation3], 1

</llo_original>
